<compile_context>
chip_gen: v7x
topology: tpu7x:2x2x1
jax: 0.10.0
libtpu: 0.0.40
codegen_flags: <defaults>
</compile_context>

<pallas_src>
import jax
import jax.numpy as jnp
from jax.experimental import pallas as pl
from jax.experimental.pallas import tpu as pltpu

D_MODEL = 256      # encoder / decoder d_model
D_SPK = 192        # speaker embedding dim
D_GLUMB = 640      # glumb_linear output (2 x 320)
N_MEL = 640        # n_mel_channels
N_MEL_PROJ = 128   # n_mel_proj
OUT_DTYPE = jnp.bfloat16   # set to jnp.float32 to reproduce PyTorch's f32 output dtype


def _select_tiling():
    """Per-generation row-tile cap and scoped-VMEM limit."""
    try:
        vmem_cap = pltpu.get_tpu_info().vmem_capacity_bytes
    except Exception:
        vmem_cap = 64 * 1024 * 1024          # conservative (v7x-like) fallback
    if vmem_cap >= 128 * 1024 * 1024:        # v5e / v6e: 128 MiB physical VMEM
        return 2048, 96 * 1024 * 1024
    return 1024, 48 * 1024 * 1024            # v7x: 64 MiB per TensorCore


def _layer_norm(x, g, b, eps=1e-5):
    """PyTorch nn.LayerNorm over the last dim; f32 math (v5e has no bf16 VPU)."""
    x = x.astype(jnp.float32)
    m = jnp.mean(x, axis=-1, keepdims=True)
    v = jnp.mean((x - m) ** 2, axis=-1, keepdims=True)
    return (x - m) * jax.lax.rsqrt(v + eps) * g + b


# ----------------------------------------------------------------------------
# Fused main path, tiled over (T-tiles, batch).
#   text_norm -> VA stub (bf16 MXU matmuls + per-batch speaker bias)
#   -> decoder_norm + speaker add -> glumb 256->640 head.
# Intermediates never leave VMEM; only the bf16, 640-wide (lane-dense) output
# is written back to HBM.
# ----------------------------------------------------------------------------
def _fused_tts_kernel(emb_ref, spk_att_ref, spk_ln_ref,
                      text_g_ref, text_b_ref,
                      va_wt_ref, va_wf_ref, va_b_ref,
                      dec_g_ref, dec_b_ref,
                      glumb_w_ref, glumb_b_ref,
                      o_ref):
    emb_bf = emb_ref[...]                                          # (tile_t, 256) bf16

    # --- text_norm(text_embeds1) (f32 LayerNorm math) -------------------------
    tn = _layer_norm(emb_bf, text_g_ref[...], text_b_ref[...])

    # --- VarianceAdaptor stub --------------------------------------------------
    # TODO(synk): real VarianceAdaptor (pitch/energy/duration, length regulator)
    # is defined elsewhere.  Stub = projection of [text_norm(emb); texts1;
    # spk_norm_att(spk)] -> 256.  The encoder-linear stub (texts1) is folded into
    # va_wf / va_b at trace time; un-fold if the real adaptor consumes texts1.
    va = (jnp.dot(tn.astype(jnp.bfloat16), va_wt_ref[...],
                  preferred_element_type=jnp.float32)
          + jnp.dot(emb_bf, va_wf_ref[...],
                    preferred_element_type=jnp.float32)
          + spk_att_ref[...] + va_b_ref[...])

    # --- decoder_norm(output) + spk_norm(speaker_emb_proj(spk)) broadcast ------
    fused = _layer_norm(va, dec_g_ref[...], dec_b_ref[...]) + spk_ln_ref[...]
    # TODO(synk): mel Decoder (transformer blocks) not defined here; identity.

    # --- glumb head: 256 -> 640 (5x128 lane-dense, unmasked stores) ------------
    out = jnp.dot(fused.astype(jnp.bfloat16), glumb_w_ref[...],
                  preferred_element_type=jnp.float32) + glumb_b_ref[...]
    o_ref[...] = out.astype(o_ref.dtype)


def fused_tts(emb_bf16, spk_att_bias, spk_ln, kp):
    B, T, _ = emb_bf16.shape
    tile_cap, vmem_limit = _select_tiling()
    tile_t = T if T <= tile_cap else tile_cap
    num_t = pl.cdiv(T, tile_t)

    def resident(shape):
        # weights / biases: same block every grid step -> stays resident in VMEM
        return pl.BlockSpec(shape, lambda t, b: (0,) * len(shape))

    return pl.pallas_call(
        _fused_tts_kernel,
        out_shape=jax.ShapeDtypeStruct((B, T, D_GLUMB), OUT_DTYPE),
        grid=(num_t, B),   # T-tiles leading -> megacore/2-TC split even at B=1
        in_specs=[
            pl.BlockSpec((None, tile_t, D_MODEL), lambda t, b: (b, t, 0)),
            pl.BlockSpec((None, 1, D_MODEL), lambda t, b: (b, 0, 0)),
            pl.BlockSpec((None, 1, D_MODEL), lambda t, b: (b, 0, 0)),
            resident((1, D_MODEL)), resident((1, D_MODEL)),
            resident((D_MODEL, D_MODEL)), resident((D_MODEL, D_MODEL)),
            resident((1, D_MODEL)),
            resident((1, D_MODEL)), resident((1, D_MODEL)),
            resident((D_MODEL, D_GLUMB)), resident((1, D_GLUMB)),
        ],
        out_specs=pl.BlockSpec((None, tile_t, D_GLUMB), lambda t, b: (b, t, 0)),
        compiler_params=pltpu.CompilerParams(
            dimension_semantics=("parallel", "parallel"),
            vmem_limit_bytes=vmem_limit),
    )(emb_bf16,
      spk_att_bias, spk_ln,
      kp["text_norm_g"], kp["text_norm_b"],
      kp["va_w_text_bf16"], kp["va_w_fold_bf16"], kp["va_b_fold"],
      kp["decoder_norm_g"], kp["decoder_norm_b"],
      kp["glumb_w_bf16"], kp["glumb_b"])


# ----------------------------------------------------------------------------
# Plain-JAX glue
# ----------------------------------------------------------------------------
def get_mask_from_lengths(lengths, max_len):
    # True at padded positions (FastSpeech2 convention).
    ids = jnp.arange(max_len)[None, :]
    return ids >= lengths[:, None]


def make_params(key):
    ks = jax.random.split(key, 8)

    def init(k, shape, dt=jnp.float32):
        return (jax.random.normal(k, shape, jnp.float32) * 0.02).astype(dt)

    p = {}
    # TODO(synk): TextEncoder internals not provided; stub = embedding + linear.
    p["token_emb"] = init(ks[0], (32, D_MODEL), jnp.bfloat16)
    p["enc_w"] = init(ks[1], (D_MODEL, D_MODEL))
    p["enc_b"] = jnp.zeros((D_MODEL,), jnp.float32)
    # LayerNorms declared in __init__
    p["text_norm_g"], p["text_norm_b"] = jnp.ones((D_MODEL,)), jnp.zeros((D_MODEL,))
    p["decoder_norm_g"], p["decoder_norm_b"] = jnp.ones((D_MODEL,)), jnp.zeros((D_MODEL,))
    p["spk_norm_g"], p["spk_norm_b"] = jnp.ones((D_MODEL,)), jnp.zeros((D_MODEL,))
    p["spk_norm_att_g"], p["spk_norm_att_b"] = jnp.ones((D_SPK,)), jnp.zeros((D_SPK,))
    # Linears declared in __init__
    p["speaker_emb_proj_w"] = init(ks[2], (D_SPK, D_MODEL))
    p["speaker_emb_proj_b"] = jnp.zeros((D_MODEL,), jnp.float32)
    p["glumb_w"] = init(ks[3], (D_MODEL, D_GLUMB), jnp.bfloat16)
    p["glumb_b"] = jnp.zeros((D_GLUMB,), jnp.float32)
    p["mel_attt_proj_w"] = init(ks[4], (N_MEL, N_MEL_PROJ))
    p["mel_attt_proj_b"] = jnp.zeros((N_MEL_PROJ,), jnp.float32)
    # TODO(synk): VarianceAdaptor internals not provided; stub weights below.
    p["va_w_text"] = init(ks[5], (D_MODEL, D_MODEL), jnp.bfloat16)
    p["va_w_enc"] = init(ks[6], (D_MODEL, D_MODEL))
    p["va_w_spk"] = init(ks[7], (D_SPK, D_MODEL))
    p["va_b"] = jnp.zeros((D_MODEL,), jnp.float32)
    return p


def comp_trans_tts_forward(params, speakers, texts, src_lens, max_src_len,
                           mels, mel_lens, max_mel_len):
    B, T_src = texts.shape

    src_masks = get_mask_from_lengths(src_lens, max_src_len)
    mel_masks = get_mask_from_lengths(mel_lens, max_mel_len)
    # NOTE: as in the original forward, masks are only computed here; they are
    # consumed inside the (stubbed) encoder / variance adaptor / decoder.

    # ----- encoder (stub) -----------------------------------------------------
    # TODO(synk): real TextEncoder not in this file; the token embedding lookup
    # happens here and the encoder linear is folded into the VA weight below.
    text_embeds1 = params["token_emb"][texts]                       # (B,T,256) bf16

    # ----- mel "one-hot projection" as a row gather ----------------------------
    # one_hot(i, 320) @ W == W[i]; avoids a (B,T_mel,640) one-hot slab.
    w_mel = params["mel_attt_proj_w"]
    mels_proj_atten = (jnp.take(w_mel, mels[:, :, 0], axis=0)
                       + jnp.take(w_mel, 320 + mels[:, :, 1], axis=0)
                       + params["mel_attt_proj_b"])                 # (B,T_mel,128)
    # TODO(synk): mels_proj_atten feeds the real VarianceAdaptor (not defined
    # here); dead under the stub, so jit/XLA DCEs it.
    del mels_proj_atten

    # ----- per-batch speaker precompute (plain JAX; B rows only) ---------------
    spk = speakers.reshape(B, D_SPK).astype(jnp.float32)
    sn = _layer_norm(spk, params["spk_norm_att_g"], params["spk_norm_att_b"])
    spk_att_bias = sn @ params["va_w_spk"]                          # (B,256)
    proj = spk @ params["speaker_emb_proj_w"] + params["speaker_emb_proj_b"]
    spk_ln = _layer_norm(proj, params["spk_norm_g"], params["spk_norm_b"])

    # ----- fold encoder-linear stub into the VA weights (trace time) ------------
    # Valid while texts1 has no other consumer (true for this stub).
    va_w_fold = (params["enc_w"] @ params["va_w_enc"]).astype(jnp.bfloat16)
    va_b_fold = params["enc_b"] @ params["va_w_enc"] + params["va_b"]

    kp = {
        "text_norm_g": params["text_norm_g"].reshape(1, D_MODEL),
        "text_norm_b": params["text_norm_b"].reshape(1, D_MODEL),
        "va_w_text_bf16": params["va_w_text"].astype(jnp.bfloat16),
        "va_w_fold_bf16": va_w_fold,
        "va_b_fold": va_b_fold.reshape(1, D_MODEL),
        "decoder_norm_g": params["decoder_norm_g"].reshape(1, D_MODEL),
        "decoder_norm_b": params["decoder_norm_b"].reshape(1, D_MODEL),
        "glumb_w_bf16": params["glumb_w"].astype(jnp.bfloat16),
        "glumb_b": params["glumb_b"].reshape(1, D_GLUMB),
    }

    # ----- fused main path ------------------------------------------------------
    # TODO(synk): the real VarianceAdaptor length-regulates T_src -> T_mel; the
    # stub keeps the source length (T_mel == T_src in this script).
    output_org = fused_tts(text_embeds1,
                           spk_att_bias.reshape(B, 1, D_MODEL),
                           spk_ln.reshape(B, 1, D_MODEL),
                           kp)                                      # (B,T,640) bf16
    output_view = output_org.reshape(B, output_org.shape[1], 2, 320)

    # variance-adaptor side outputs (stubbed)
    p_predictions = jnp.zeros((B, T_src), jnp.float32)
    e_predictions = jnp.zeros((B, T_src), jnp.float32)
    log_d_predictions = jnp.zeros((B, T_src), jnp.float32)
    d_rounded = jnp.ones((B, T_src), jnp.int32)
    attn_outs, prosody_info = None, None
    p_targets, e_targets = None, None

    return (output_org, output_view, p_predictions, e_predictions,
            log_d_predictions, d_rounded, src_masks, mel_masks,
            src_lens, mel_lens, attn_outs, prosody_info, p_targets, e_targets)


# ----------------------------------------------------------------------------
if __name__ == "__main__":
    key = jax.random.PRNGKey(0)
    k_sp, k_tx, k_ml, k_pr = jax.random.split(key, 4)

    B, T_SRC, T_MEL = 2, 8, 8
    speakers = jax.random.normal(k_sp, (B, 1, D_SPK), jnp.float32)
    texts = jax.random.randint(k_tx, (B, T_SRC), 0, 32, jnp.int32)
    src_lens = jnp.array([8, 6], jnp.int32)
    mels = jax.random.randint(k_ml, (B, T_MEL, 2), 0, 320, jnp.int32)
    mel_lens = jnp.array([8, 7], jnp.int32)

    params = make_params(k_pr)

    fwd = jax.jit(comp_trans_tts_forward,
                  static_argnames=("max_src_len", "max_mel_len"))
    outs = fwd(params, speakers, texts, src_lens, max_src_len=T_SRC,
               mels=mels, mel_lens=mel_lens, max_mel_len=T_MEL)
    jax.block_until_ready(outs[0])
    jax.block_until_ready(outs[1])
    assert outs[0].shape == (B, T_SRC, 640)
    assert outs[1].shape == (B, T_SRC, 2, 320)
    assert bool(jnp.isfinite(outs[0].astype(jnp.float32)).all())
    print("KERNEL_OK")
</pallas_src>

<mosaic_0001>
module attributes {stable_mosaic.version = 11 : i64} {
  func.func @_fused_tts_kernel(%arg0: i32, %arg1: i32, %arg2: memref<1x8x256xbf16, #tpu.memory_space<vmem>>, %arg3: memref<1x1x256xf32, #tpu.memory_space<vmem>>, %arg4: memref<1x1x256xf32, #tpu.memory_space<vmem>>, %arg5: memref<1x256xf32, #tpu.memory_space<vmem>>, %arg6: memref<1x256xf32, #tpu.memory_space<vmem>>, %arg7: memref<256x256xbf16, #tpu.memory_space<vmem>>, %arg8: memref<256x256xbf16, #tpu.memory_space<vmem>>, %arg9: memref<1x256xf32, #tpu.memory_space<vmem>>, %arg10: memref<1x256xf32, #tpu.memory_space<vmem>>, %arg11: memref<1x256xf32, #tpu.memory_space<vmem>>, %arg12: memref<256x640xbf16, #tpu.memory_space<vmem>>, %arg13: memref<1x640xf32, #tpu.memory_space<vmem>>, %arg14: memref<1x8x640xbf16, #tpu.memory_space<vmem>>) attributes {dimension_semantics = [#tpu.dimension_semantics<parallel>, #tpu.dimension_semantics<parallel>], iteration_bounds = array<i64: 1, 2>, scalar_prefetch = 0 : i64, scratch_operands = 0 : i64, tpu.core_type = #tpu.core_type<tc>, window_params = [{transform_indices = @transform_0, window_bounds = array<i64: 1, 8, 256>}, {transform_indices = @transform_1, window_bounds = array<i64: 1, 1, 256>}, {transform_indices = @transform_2, window_bounds = array<i64: 1, 1, 256>}, {pipeline_mode = #tpu.pipeline_mode<synchronous>, transform_indices = @transform_3, window_bounds = array<i64: 1, 256>}, {pipeline_mode = #tpu.pipeline_mode<synchronous>, transform_indices = @transform_4, window_bounds = array<i64: 1, 256>}, {pipeline_mode = #tpu.pipeline_mode<synchronous>, transform_indices = @transform_5, window_bounds = array<i64: 256, 256>}, {pipeline_mode = #tpu.pipeline_mode<synchronous>, transform_indices = @transform_6, window_bounds = array<i64: 256, 256>}, {pipeline_mode = #tpu.pipeline_mode<synchronous>, transform_indices = @transform_7, window_bounds = array<i64: 1, 256>}, {pipeline_mode = #tpu.pipeline_mode<synchronous>, transform_indices = @transform_8, window_bounds = array<i64: 1, 256>}, {pipeline_mode = #tpu.pipeline_mode<synchronous>, transform_indices = @transform_9, window_bounds = array<i64: 1, 256>}, {pipeline_mode = #tpu.pipeline_mode<synchronous>, transform_indices = @transform_10, window_bounds = array<i64: 256, 640>}, {pipeline_mode = #tpu.pipeline_mode<synchronous>, transform_indices = @transform_11, window_bounds = array<i64: 1, 640>}, {transform_indices = @transform_12, window_bounds = array<i64: 1, 8, 640>}]} {
    %c0 = arith.constant 0 : index
    %c0_0 = arith.constant 0 : index
    %c0_1 = arith.constant 0 : index
    %0 = vector.load %arg2[%c0, %c0_0, %c0_1] : memref<1x8x256xbf16, #tpu.memory_space<vmem>>, vector<1x8x256xbf16>
    %1 = vector.shape_cast %0 : vector<1x8x256xbf16> to vector<8x256xbf16>
    %c0_2 = arith.constant 0 : index
    %c0_3 = arith.constant 0 : index
    %2 = vector.load %arg5[%c0_2, %c0_3] : memref<1x256xf32, #tpu.memory_space<vmem>>, vector<1x256xf32>
    %c0_4 = arith.constant 0 : index
    %c0_5 = arith.constant 0 : index
    %3 = vector.load %arg6[%c0_4, %c0_5] : memref<1x256xf32, #tpu.memory_space<vmem>>, vector<1x256xf32>
    %4 = arith.extf %1 : vector<8x256xbf16> to vector<8x256xf32>
    %cst = arith.constant dense<0.000000e+00> : vector<8xf32>
    %5 = vector.multi_reduction <add>, %4, %cst [1] : vector<8x256xf32> to vector<8xf32>
    %6 = vector.shape_cast %5 : vector<8xf32> to vector<8x1xf32>
    %cst_6 = arith.constant 2.560000e+02 : f32
    %7 = vector.broadcast %cst_6 : f32 to vector<8x1xf32>
    %8 = arith.divf %6, %7 : vector<8x1xf32>
    %9 = vector.broadcast %8 : vector<8x1xf32> to vector<8x256xf32>
    %10 = arith.subf %4, %9 : vector<8x256xf32>
    %11 = arith.mulf %10, %10 : vector<8x256xf32>
    %cst_7 = arith.constant dense<0.000000e+00> : vector<8xf32>
    %12 = vector.multi_reduction <add>, %11, %cst_7 [1] : vector<8x256xf32> to vector<8xf32>
    %13 = vector.shape_cast %12 : vector<8xf32> to vector<8x1xf32>
    %cst_8 = arith.constant 2.560000e+02 : f32
    %14 = vector.broadcast %cst_8 : f32 to vector<8x1xf32>
    %15 = arith.divf %13, %14 : vector<8x1xf32>
    %16 = vector.broadcast %8 : vector<8x1xf32> to vector<8x256xf32>
    %17 = arith.subf %4, %16 : vector<8x256xf32>
    %cst_9 = arith.constant 9.99999974E-6 : f32
    %18 = vector.broadcast %cst_9 : f32 to vector<8x1xf32>
    %19 = arith.addf %15, %18 : vector<8x1xf32>
    %20 = math.rsqrt %19 : vector<8x1xf32>
    %21 = vector.broadcast %20 : vector<8x1xf32> to vector<8x256xf32>
    %22 = arith.mulf %17, %21 : vector<8x256xf32>
    %23 = vector.broadcast %2 : vector<1x256xf32> to vector<8x256xf32>
    %24 = arith.mulf %22, %23 : vector<8x256xf32>
    %25 = vector.broadcast %3 : vector<1x256xf32> to vector<8x256xf32>
    %26 = arith.addf %24, %25 : vector<8x256xf32>
    %27 = arith.truncf %26 : vector<8x256xf32> to vector<8x256xbf16>
    %c0_10 = arith.constant 0 : index
    %c0_11 = arith.constant 0 : index
    %28 = vector.load %arg7[%c0_10, %c0_11] : memref<256x256xbf16, #tpu.memory_space<vmem>>, vector<256x256xbf16>
    %cst_12 = arith.constant dense<0.000000e+00> : vector<8x256xf32>
    %29 = tpu.matmul %27, %28, %cst_12 {dimension_numbers = #tpu.dot_dimension_numbers<[1], [0], [0], [1], [0, 0, 1, 1], [], []>} : vector<8x256xbf16>, vector<256x256xbf16>, vector<8x256xf32> -> vector<8x256xf32>
    %c0_13 = arith.constant 0 : index
    %c0_14 = arith.constant 0 : index
    %30 = vector.load %arg8[%c0_13, %c0_14] : memref<256x256xbf16, #tpu.memory_space<vmem>>, vector<256x256xbf16>
    %cst_15 = arith.constant dense<0.000000e+00> : vector<8x256xf32>
    %31 = tpu.matmul %1, %30, %cst_15 {dimension_numbers = #tpu.dot_dimension_numbers<[1], [0], [0], [1], [0, 0, 1, 1], [], []>} : vector<8x256xbf16>, vector<256x256xbf16>, vector<8x256xf32> -> vector<8x256xf32>
    %32 = arith.addf %29, %31 : vector<8x256xf32>
    %c0_16 = arith.constant 0 : index
    %c0_17 = arith.constant 0 : index
    %c0_18 = arith.constant 0 : index
    %33 = vector.load %arg3[%c0_16, %c0_17, %c0_18] : memref<1x1x256xf32, #tpu.memory_space<vmem>>, vector<1x1x256xf32>
    %34 = vector.shape_cast %33 : vector<1x1x256xf32> to vector<1x256xf32>
    %35 = vector.broadcast %34 : vector<1x256xf32> to vector<8x256xf32>
    %36 = arith.addf %32, %35 : vector<8x256xf32>
    %c0_19 = arith.constant 0 : index
    %c0_20 = arith.constant 0 : index
    %37 = vector.load %arg9[%c0_19, %c0_20] : memref<1x256xf32, #tpu.memory_space<vmem>>, vector<1x256xf32>
    %38 = vector.broadcast %37 : vector<1x256xf32> to vector<8x256xf32>
    %39 = arith.addf %36, %38 : vector<8x256xf32>
    %c0_21 = arith.constant 0 : index
    %c0_22 = arith.constant 0 : index
    %40 = vector.load %arg10[%c0_21, %c0_22] : memref<1x256xf32, #tpu.memory_space<vmem>>, vector<1x256xf32>
    %c0_23 = arith.constant 0 : index
    %c0_24 = arith.constant 0 : index
    %41 = vector.load %arg11[%c0_23, %c0_24] : memref<1x256xf32, #tpu.memory_space<vmem>>, vector<1x256xf32>
    %cst_25 = arith.constant dense<0.000000e+00> : vector<8xf32>
    %42 = vector.multi_reduction <add>, %39, %cst_25 [1] : vector<8x256xf32> to vector<8xf32>
    %43 = vector.shape_cast %42 : vector<8xf32> to vector<8x1xf32>
    %cst_26 = arith.constant 2.560000e+02 : f32
    %44 = vector.broadcast %cst_26 : f32 to vector<8x1xf32>
    %45 = arith.divf %43, %44 : vector<8x1xf32>
    %46 = vector.broadcast %45 : vector<8x1xf32> to vector<8x256xf32>
    %47 = arith.subf %39, %46 : vector<8x256xf32>
    %48 = arith.mulf %47, %47 : vector<8x256xf32>
    %cst_27 = arith.constant dense<0.000000e+00> : vector<8xf32>
    %49 = vector.multi_reduction <add>, %48, %cst_27 [1] : vector<8x256xf32> to vector<8xf32>
    %50 = vector.shape_cast %49 : vector<8xf32> to vector<8x1xf32>
    %cst_28 = arith.constant 2.560000e+02 : f32
    %51 = vector.broadcast %cst_28 : f32 to vector<8x1xf32>
    %52 = arith.divf %50, %51 : vector<8x1xf32>
    %53 = vector.broadcast %45 : vector<8x1xf32> to vector<8x256xf32>
    %54 = arith.subf %39, %53 : vector<8x256xf32>
    %cst_29 = arith.constant 9.99999974E-6 : f32
    %55 = vector.broadcast %cst_29 : f32 to vector<8x1xf32>
    %56 = arith.addf %52, %55 : vector<8x1xf32>
    %57 = math.rsqrt %56 : vector<8x1xf32>
    %58 = vector.broadcast %57 : vector<8x1xf32> to vector<8x256xf32>
    %59 = arith.mulf %54, %58 : vector<8x256xf32>
    %60 = vector.broadcast %40 : vector<1x256xf32> to vector<8x256xf32>
    %61 = arith.mulf %59, %60 : vector<8x256xf32>
    %62 = vector.broadcast %41 : vector<1x256xf32> to vector<8x256xf32>
    %63 = arith.addf %61, %62 : vector<8x256xf32>
    %c0_30 = arith.constant 0 : index
    %c0_31 = arith.constant 0 : index
    %c0_32 = arith.constant 0 : index
    %64 = vector.load %arg4[%c0_30, %c0_31, %c0_32] : memref<1x1x256xf32, #tpu.memory_space<vmem>>, vector<1x1x256xf32>
    %65 = vector.shape_cast %64 : vector<1x1x256xf32> to vector<1x256xf32>
    %66 = vector.broadcast %65 : vector<1x256xf32> to vector<8x256xf32>
    %67 = arith.addf %63, %66 : vector<8x256xf32>
    %68 = arith.truncf %67 : vector<8x256xf32> to vector<8x256xbf16>
    %c0_33 = arith.constant 0 : index
    %c0_34 = arith.constant 0 : index
    %69 = vector.load %arg12[%c0_33, %c0_34] : memref<256x640xbf16, #tpu.memory_space<vmem>>, vector<256x640xbf16>
    %cst_35 = arith.constant dense<0.000000e+00> : vector<8x640xf32>
    %70 = tpu.matmul %68, %69, %cst_35 {dimension_numbers = #tpu.dot_dimension_numbers<[1], [0], [0], [1], [0, 0, 1, 1], [], []>} : vector<8x256xbf16>, vector<256x640xbf16>, vector<8x640xf32> -> vector<8x640xf32>
    %c0_36 = arith.constant 0 : index
    %c0_37 = arith.constant 0 : index
    %71 = vector.load %arg13[%c0_36, %c0_37] : memref<1x640xf32, #tpu.memory_space<vmem>>, vector<1x640xf32>
    %72 = vector.broadcast %71 : vector<1x640xf32> to vector<8x640xf32>
    %73 = arith.addf %70, %72 : vector<8x640xf32>
    %74 = arith.truncf %73 : vector<8x640xf32> to vector<8x640xbf16>
    %c0_38 = arith.constant 0 : index
    %c0_39 = arith.constant 0 : index
    %c0_40 = arith.constant 0 : index
    %75 = vector.load %arg14[%c0_38, %c0_39, %c0_40] : memref<1x8x640xbf16, #tpu.memory_space<vmem>>, vector<1x8x640xbf16>
    %76 = vector.shape_cast %75 : vector<1x8x640xbf16> to vector<8x640xbf16>
    %77 = vector.shape_cast %74 : vector<8x640xbf16> to vector<1x8x640xbf16>
    tpu.vector_store %arg14[%c0_38, %c0_39, %c0_40], %77 {strides = array<i32>} : memref<1x8x640xbf16, #tpu.memory_space<vmem>>, vector<1x8x640xbf16>,
    return
  }
  func.func @transform_0(%arg0: i32, %arg1: i32) -> (i32, i32, i32) {
    %c0_i32 = arith.constant 0 : i32
    %c0_i32_0 = arith.constant 0 : i32
    return %arg1, %arg0, %c0_i32 : i32, i32, i32
  }
  func.func @transform_1(%arg0: i32, %arg1: i32) -> (i32, i32, i32) {
    %c0_i32 = arith.constant 0 : i32
    %c0_i32_0 = arith.constant 0 : i32
    %c0_i32_1 = arith.constant 0 : i32
    return %arg1, %c0_i32, %c0_i32_0 : i32, i32, i32
  }
  func.func @transform_2(%arg0: i32, %arg1: i32) -> (i32, i32, i32) {
    %c0_i32 = arith.constant 0 : i32
    %c0_i32_0 = arith.constant 0 : i32
    %c0_i32_1 = arith.constant 0 : i32
    return %arg1, %c0_i32, %c0_i32_0 : i32, i32, i32
  }
  func.func @transform_3(%arg0: i32, %arg1: i32) -> (i32, i32) {
    %c0_i32 = arith.constant 0 : i32
    %c0_i32_0 = arith.constant 0 : i32
    %c0_i32_1 = arith.constant 0 : i32
    return %c0_i32, %c0_i32_0 : i32, i32
  }
  func.func @transform_4(%arg0: i32, %arg1: i32) -> (i32, i32) {
    %c0_i32 = arith.constant 0 : i32
    %c0_i32_0 = arith.constant 0 : i32
    %c0_i32_1 = arith.constant 0 : i32
    return %c0_i32, %c0_i32_0 : i32, i32
  }
  func.func @transform_5(%arg0: i32, %arg1: i32) -> (i32, i32) {
    %c0_i32 = arith.constant 0 : i32
    %c0_i32_0 = arith.constant 0 : i32
    %c0_i32_1 = arith.constant 0 : i32
    return %c0_i32, %c0_i32_0 : i32, i32
  }
  func.func @transform_6(%arg0: i32, %arg1: i32) -> (i32, i32) {
    %c0_i32 = arith.constant 0 : i32
    %c0_i32_0 = arith.constant 0 : i32
    %c0_i32_1 = arith.constant 0 : i32
    return %c0_i32, %c0_i32_0 : i32, i32
  }
  func.func @transform_7(%arg0: i32, %arg1: i32) -> (i32, i32) {
    %c0_i32 = arith.constant 0 : i32
    %c0_i32_0 = arith.constant 0 : i32
    %c0_i32_1 = arith.constant 0 : i32
    return %c0_i32, %c0_i32_0 : i32, i32
  }
  func.func @transform_8(%arg0: i32, %arg1: i32) -> (i32, i32) {
    %c0_i32 = arith.constant 0 : i32
    %c0_i32_0 = arith.constant 0 : i32
    %c0_i32_1 = arith.constant 0 : i32
    return %c0_i32, %c0_i32_0 : i32, i32
  }
  func.func @transform_9(%arg0: i32, %arg1: i32) -> (i32, i32) {
    %c0_i32 = arith.constant 0 : i32
    %c0_i32_0 = arith.constant 0 : i32
    %c0_i32_1 = arith.constant 0 : i32
    return %c0_i32, %c0_i32_0 : i32, i32
  }
  func.func @transform_10(%arg0: i32, %arg1: i32) -> (i32, i32) {
    %c0_i32 = arith.constant 0 : i32
    %c0_i32_0 = arith.constant 0 : i32
    %c0_i32_1 = arith.constant 0 : i32
    return %c0_i32, %c0_i32_0 : i32, i32
  }
  func.func @transform_11(%arg0: i32, %arg1: i32) -> (i32, i32) {
    %c0_i32 = arith.constant 0 : i32
    %c0_i32_0 = arith.constant 0 : i32
    %c0_i32_1 = arith.constant 0 : i32
    return %c0_i32, %c0_i32_0 : i32, i32
  }
  func.func @transform_12(%arg0: i32, %arg1: i32) -> (i32, i32, i32) {
    %c0_i32 = arith.constant 0 : i32
    %c0_i32_0 = arith.constant 0 : i32
    return %arg1, %arg0, %c0_i32 : i32, i32, i32
  }
}

</mosaic_0001>

<llo_original>
// kernel: comp_trans_tts_forward.1
$region0: #{comp_trans_tts_forward.1}
  #allocation0 [shape = 'u32[]', space=smem, size = 0x4, offset = 0x4, fixed_abs, tag = 'smem constant byte address 0x4 - core index']
  #allocation1 [shape = 'u32[144,128]{1,0:T(1,128)}', space=vmem, size = 0x12000, scoped, tag = 'internal scratch']
  %s0 = inlined_call_operand.vmem [shape: bf16[2,8,256], index: 0, kind: input, shape index: {}]
  %s1 = inlined_call_operand.vmem [shape: f32[2,1,256], index: 1, kind: input, shape index: {}]
  %s2 = inlined_call_operand.vmem [shape: f32[2,1,256], index: 2, kind: input, shape index: {}]
  %s3 = inlined_call_operand.vmem [shape: f32[1,256], index: 3, kind: input, shape index: {}]
  %s4 = inlined_call_operand.vmem [shape: f32[1,256], index: 4, kind: input, shape index: {}]
  %s5 = inlined_call_operand.vmem [shape: bf16[256,256], index: 5, kind: input, shape index: {}]
  %s6 = inlined_call_operand.vmem [shape: bf16[256,256], index: 6, kind: input, shape index: {}]
  %s7 = inlined_call_operand.vmem [shape: f32[1,256], index: 7, kind: input, shape index: {}]
  %s8 = inlined_call_operand.vmem [shape: f32[1,256], index: 8, kind: input, shape index: {}]
  %s9 = inlined_call_operand.vmem [shape: f32[1,256], index: 9, kind: input, shape index: {}]
  %s10 = inlined_call_operand.vmem [shape: bf16[256,640], index: 10, kind: input, shape index: {}]
  %s11 = inlined_call_operand.vmem [shape: f32[1,640], index: 11, kind: input, shape index: {}]
  %s12 = inlined_call_operand.vmem [shape: bf16[2,8,640], index: 12, kind: output, shape index: {}]
  %s13 = sld [smem:[#allocation0]]
  $region81: #{comp_trans_tts_forward.1} parent=0
    _
  %s15 = ssub.s32 1, %s13
  %s16 = scalar_select 0, %s15, %s13
  loop: start=0, step=1, limit=4
  $region2: #{comp_trans_tts_forward.1} parent=0 // loop_pre_header
    _
  $region3: #{comp_trans_tts_forward.1} parent=0 // loop_header
    %s18 = sphi 0, %s22
    %p19 = scmp.ge.s32.totalorder %s18, 4
    %s25 = sphi 0, %s37
    %s26 = sphi 0, %s33
    %s27 = sphi 0, %s25
    %s28 = sphi 0, %s26
    %s29 = sphi 0, %s27
    %s30 = sphi 0, %s28
    %s42 = sphi 0, %s44
    %s45 = sphi 0, %s42
    %s46 = sphi 0, %s45
    %s62 = sphi 0, %s46
    %s68 = sphi 0, %s70
    %s71 = sphi 0, %s68
    %s72 = sphi 0, %s71
    %s88 = sphi 0, %s72
    %s94 = sphi 0, %s96
    %s97 = sphi 0, %s94
    %s98 = sphi 0, %s97
    %s114 = sphi 0, %s98
    %s118 = sphi 0, %s118
    %s120 = sphi 0, %s118
    %s121 = sphi 0, %s120
    %s135 = sphi 0, %s121
    %s139 = sphi 0, %s139
    %s141 = sphi 0, %s139
    %s142 = sphi 0, %s141
    %s156 = sphi 0, %s142
    %s160 = sphi 0, %s160
    %s162 = sphi 0, %s160
    %s163 = sphi 0, %s162
    %s177 = sphi 0, %s163
    %s181 = sphi 0, %s181
    %s183 = sphi 0, %s181
    %s184 = sphi 0, %s183
    %s198 = sphi 0, %s184
    %s202 = sphi 0, %s202
    %s204 = sphi 0, %s202
    %s205 = sphi 0, %s204
    %s219 = sphi 0, %s205
    %s223 = sphi 0, %s223
    %s225 = sphi 0, %s223
    %s226 = sphi 0, %s225
    %s240 = sphi 0, %s226
    %s244 = sphi 0, %s244
    %s246 = sphi 0, %s244
    %s247 = sphi 0, %s246
    %s261 = sphi 0, %s247
    %s265 = sphi 0, %s265
    %s267 = sphi 0, %s265
    %s268 = sphi 0, %s267
    %s282 = sphi 0, %s268
    %s286 = sphi 0, %s286
    %s288 = sphi 0, %s286
    %s289 = sphi 0, %s288
    %s303 = sphi 0, %s289
    %s311 = sphi 0, %s313
    %s314 = sphi 0, %s311
    %s315 = sphi 0, %s314
    %s331 = sphi 0, %s315
  $region4: #{comp_trans_tts_forward.1} parent=0 // loop_header_branch
    %21 = sbr.rel (%p19) target = $region8
  $region5: #{comp_trans_tts_forward.1} parent=0 // loop_body
    %s23 = ssub.s32 %s18, 1
    %s24 = ssub.s32 %s18, 2
    %s31 = sadd.s32 1, %s26
    %p32 = scmp.ge.s32.totalorder %s31, 2
    %s33 = scalar_select %p32, 0, %s31
    %s34 = sadd.s32 1, %s25
    %s35 = scalar_select %p32, %s34, %s25
    %p36 = scmp.ge.s32.totalorder %s35, 1
    %s37 = scalar_select %p36, 0, %s35
    %s38 = ssub.s32 %s26, %s33
    %s39 = ssub.s32 %s25, %s37
    %s40 = sor.u32 %s38, %s39
    %p41 = scmp.eq.s32.totalorder %s40, 0
    %s43 = sadd.s32 %s42, 1
    %s44 = scalar_select %p41, %s42, %s43
    %p47 = pneg %p41
    %p48 = scmp.eq.s32.totalorder %s18, 1
    %p49 = por %p47, %p48
    %p50 = scmp.ne.s32.totalorder %s42, %s45
    %p51 = scmp.eq.s32.totalorder %s18, 0
    %p52 = por %p50, %p51
    %p53 = scmp.ne.s32.totalorder %s42, %s45
    %p54 = scmp.eq.s32.totalorder %s23, 1
    %p55 = por %p53, %p54
    %p56 = scmp.ne.s32.totalorder %s45, %s46
    %p57 = scmp.eq.s32.totalorder %s23, 0
    %p58 = por %p56, %p57
    %p59 = scmp.ne.s32.totalorder %s45, %s46
    %p60 = scmp.eq.s32.totalorder %s24, 1
    %p61 = por %p59, %p60
    %p63 = scmp.ne.s32.totalorder %s46, %s62
    %p64 = scmp.eq.s32.totalorder %s24, 0
    %p65 = por %p63, %p64
    %s66 = ssub.s32 %s26, %s33
    %p67 = scmp.eq.s32.totalorder %s66, 0
    %s69 = sadd.s32 %s68, 1
    %s70 = scalar_select %p67, %s68, %s69
    %p73 = pneg %p67
    %p74 = scmp.eq.s32.totalorder %s18, 1
    %p75 = por %p73, %p74
    %p76 = scmp.ne.s32.totalorder %s68, %s71
    %p77 = scmp.eq.s32.totalorder %s18, 0
    %p78 = por %p76, %p77
    %p79 = scmp.ne.s32.totalorder %s68, %s71
    %p80 = scmp.eq.s32.totalorder %s23, 1
    %p81 = por %p79, %p80
    %p82 = scmp.ne.s32.totalorder %s71, %s72
    %p83 = scmp.eq.s32.totalorder %s23, 0
    %p84 = por %p82, %p83
    %p85 = scmp.ne.s32.totalorder %s71, %s72
    %p86 = scmp.eq.s32.totalorder %s24, 1
    %p87 = por %p85, %p86
    %p89 = scmp.ne.s32.totalorder %s72, %s88
    %p90 = scmp.eq.s32.totalorder %s24, 0
    %p91 = por %p89, %p90
    %s92 = ssub.s32 %s26, %s33
    %p93 = scmp.eq.s32.totalorder %s92, 0
    %s95 = sadd.s32 %s94, 1
    %s96 = scalar_select %p93, %s94, %s95
    %p99 = pneg %p93
    %p100 = scmp.eq.s32.totalorder %s18, 1
    %p101 = por %p99, %p100
    %p102 = scmp.ne.s32.totalorder %s94, %s97
    %p103 = scmp.eq.s32.totalorder %s18, 0
    %p104 = por %p102, %p103
    %p105 = scmp.ne.s32.totalorder %s94, %s97
    %p106 = scmp.eq.s32.totalorder %s23, 1
    %p107 = por %p105, %p106
    %p108 = scmp.ne.s32.totalorder %s97, %s98
    %p109 = scmp.eq.s32.totalorder %s23, 0
    %p110 = por %p108, %p109
    %p111 = scmp.ne.s32.totalorder %s97, %s98
    %p112 = scmp.eq.s32.totalorder %s24, 1
    %p113 = por %p111, %p112
    %p115 = scmp.ne.s32.totalorder %s98, %s114
    %p116 = scmp.eq.s32.totalorder %s24, 0
    %p117 = por %p115, %p116
    %s119 = sadd.s32 %s118, 1
    %p122 = scmp.eq.s32.totalorder %s18, 1
    %p123 = scmp.ne.s32.totalorder %s118, %s120
    %p124 = scmp.eq.s32.totalorder %s18, 0
    %p125 = por %p123, %p124
    %p126 = scmp.ne.s32.totalorder %s118, %s120
    %p127 = scmp.eq.s32.totalorder %s23, 1
    %p128 = por %p126, %p127
    %p129 = scmp.ne.s32.totalorder %s120, %s121
    %p130 = scmp.eq.s32.totalorder %s23, 0
    %p131 = por %p129, %p130
    %p132 = scmp.ne.s32.totalorder %s120, %s121
    %p133 = scmp.eq.s32.totalorder %s24, 1
    %p134 = por %p132, %p133
    %p136 = scmp.ne.s32.totalorder %s121, %s135
    %p137 = scmp.eq.s32.totalorder %s24, 0
    %p138 = por %p136, %p137
    %s140 = sadd.s32 %s139, 1
    %p143 = scmp.eq.s32.totalorder %s18, 1
    %p144 = scmp.ne.s32.totalorder %s139, %s141
    %p145 = scmp.eq.s32.totalorder %s18, 0
    %p146 = por %p144, %p145
    %p147 = scmp.ne.s32.totalorder %s139, %s141
    %p148 = scmp.eq.s32.totalorder %s23, 1
    %p149 = por %p147, %p148
    %p150 = scmp.ne.s32.totalorder %s141, %s142
    %p151 = scmp.eq.s32.totalorder %s23, 0
    %p152 = por %p150, %p151
    %p153 = scmp.ne.s32.totalorder %s141, %s142
    %p154 = scmp.eq.s32.totalorder %s24, 1
    %p155 = por %p153, %p154
    %p157 = scmp.ne.s32.totalorder %s142, %s156
    %p158 = scmp.eq.s32.totalorder %s24, 0
    %p159 = por %p157, %p158
    %s161 = sadd.s32 %s160, 1
    %p164 = scmp.eq.s32.totalorder %s18, 1
    %p165 = scmp.ne.s32.totalorder %s160, %s162
    %p166 = scmp.eq.s32.totalorder %s18, 0
    %p167 = por %p165, %p166
    %p168 = scmp.ne.s32.totalorder %s160, %s162
    %p169 = scmp.eq.s32.totalorder %s23, 1
    %p170 = por %p168, %p169
    %p171 = scmp.ne.s32.totalorder %s162, %s163
    %p172 = scmp.eq.s32.totalorder %s23, 0
    %p173 = por %p171, %p172
    %p174 = scmp.ne.s32.totalorder %s162, %s163
    %p175 = scmp.eq.s32.totalorder %s24, 1
    %p176 = por %p174, %p175
    %p178 = scmp.ne.s32.totalorder %s163, %s177
    %p179 = scmp.eq.s32.totalorder %s24, 0
    %p180 = por %p178, %p179
    %s182 = sadd.s32 %s181, 1
    %p185 = scmp.eq.s32.totalorder %s18, 1
    %p186 = scmp.ne.s32.totalorder %s181, %s183
    %p187 = scmp.eq.s32.totalorder %s18, 0
    %p188 = por %p186, %p187
    %p189 = scmp.ne.s32.totalorder %s181, %s183
    %p190 = scmp.eq.s32.totalorder %s23, 1
    %p191 = por %p189, %p190
    %p192 = scmp.ne.s32.totalorder %s183, %s184
    %p193 = scmp.eq.s32.totalorder %s23, 0
    %p194 = por %p192, %p193
    %p195 = scmp.ne.s32.totalorder %s183, %s184
    %p196 = scmp.eq.s32.totalorder %s24, 1
    %p197 = por %p195, %p196
    %p199 = scmp.ne.s32.totalorder %s184, %s198
    %p200 = scmp.eq.s32.totalorder %s24, 0
    %p201 = por %p199, %p200
    %s203 = sadd.s32 %s202, 1
    %p206 = scmp.eq.s32.totalorder %s18, 1
    %p207 = scmp.ne.s32.totalorder %s202, %s204
    %p208 = scmp.eq.s32.totalorder %s18, 0
    %p209 = por %p207, %p208
    %p210 = scmp.ne.s32.totalorder %s202, %s204
    %p211 = scmp.eq.s32.totalorder %s23, 1
    %p212 = por %p210, %p211
    %p213 = scmp.ne.s32.totalorder %s204, %s205
    %p214 = scmp.eq.s32.totalorder %s23, 0
    %p215 = por %p213, %p214
    %p216 = scmp.ne.s32.totalorder %s204, %s205
    %p217 = scmp.eq.s32.totalorder %s24, 1
    %p218 = por %p216, %p217
    %p220 = scmp.ne.s32.totalorder %s205, %s219
    %p221 = scmp.eq.s32.totalorder %s24, 0
    %p222 = por %p220, %p221
    %s224 = sadd.s32 %s223, 1
    %p227 = scmp.eq.s32.totalorder %s18, 1
    %p228 = scmp.ne.s32.totalorder %s223, %s225
    %p229 = scmp.eq.s32.totalorder %s18, 0
    %p230 = por %p228, %p229
    %p231 = scmp.ne.s32.totalorder %s223, %s225
    %p232 = scmp.eq.s32.totalorder %s23, 1
    %p233 = por %p231, %p232
    %p234 = scmp.ne.s32.totalorder %s225, %s226
    %p235 = scmp.eq.s32.totalorder %s23, 0
    %p236 = por %p234, %p235
    %p237 = scmp.ne.s32.totalorder %s225, %s226
    %p238 = scmp.eq.s32.totalorder %s24, 1
    %p239 = por %p237, %p238
    %p241 = scmp.ne.s32.totalorder %s226, %s240
    %p242 = scmp.eq.s32.totalorder %s24, 0
    %p243 = por %p241, %p242
    %s245 = sadd.s32 %s244, 1
    %p248 = scmp.eq.s32.totalorder %s18, 1
    %p249 = scmp.ne.s32.totalorder %s244, %s246
    %p250 = scmp.eq.s32.totalorder %s18, 0
    %p251 = por %p249, %p250
    %p252 = scmp.ne.s32.totalorder %s244, %s246
    %p253 = scmp.eq.s32.totalorder %s23, 1
    %p254 = por %p252, %p253
    %p255 = scmp.ne.s32.totalorder %s246, %s247
    %p256 = scmp.eq.s32.totalorder %s23, 0
    %p257 = por %p255, %p256
    %p258 = scmp.ne.s32.totalorder %s246, %s247
    %p259 = scmp.eq.s32.totalorder %s24, 1
    %p260 = por %p258, %p259
    %p262 = scmp.ne.s32.totalorder %s247, %s261
    %p263 = scmp.eq.s32.totalorder %s24, 0
    %p264 = por %p262, %p263
    %s266 = sadd.s32 %s265, 1
    %p269 = scmp.eq.s32.totalorder %s18, 1
    %p270 = scmp.ne.s32.totalorder %s265, %s267
    %p271 = scmp.eq.s32.totalorder %s18, 0
    %p272 = por %p270, %p271
    %p273 = scmp.ne.s32.totalorder %s265, %s267
    %p274 = scmp.eq.s32.totalorder %s23, 1
    %p275 = por %p273, %p274
    %p276 = scmp.ne.s32.totalorder %s267, %s268
    %p277 = scmp.eq.s32.totalorder %s23, 0
    %p278 = por %p276, %p277
    %p279 = scmp.ne.s32.totalorder %s267, %s268
    %p280 = scmp.eq.s32.totalorder %s24, 1
    %p281 = por %p279, %p280
    %p283 = scmp.ne.s32.totalorder %s268, %s282
    %p284 = scmp.eq.s32.totalorder %s24, 0
    %p285 = por %p283, %p284
    %s287 = sadd.s32 %s286, 1
    %p290 = scmp.eq.s32.totalorder %s18, 1
    %p291 = scmp.ne.s32.totalorder %s286, %s288
    %p292 = scmp.eq.s32.totalorder %s18, 0
    %p293 = por %p291, %p292
    %p294 = scmp.ne.s32.totalorder %s286, %s288
    %p295 = scmp.eq.s32.totalorder %s23, 1
    %p296 = por %p294, %p295
    %p297 = scmp.ne.s32.totalorder %s288, %s289
    %p298 = scmp.eq.s32.totalorder %s23, 0
    %p299 = por %p297, %p298
    %p300 = scmp.ne.s32.totalorder %s288, %s289
    %p301 = scmp.eq.s32.totalorder %s24, 1
    %p302 = por %p300, %p301
    %p304 = scmp.ne.s32.totalorder %s289, %s303
    %p305 = scmp.eq.s32.totalorder %s24, 0
    %p306 = por %p304, %p305
    %s307 = ssub.s32 %s26, %s33
    %s308 = ssub.s32 %s25, %s37
    %s309 = sor.u32 %s307, %s308
    %p310 = scmp.eq.s32.totalorder %s309, 0
    %s312 = sadd.s32 %s311, 1
    %s313 = scalar_select %p310, %s311, %s312
    %p316 = pneg %p310
    %p317 = scmp.eq.s32.totalorder %s18, 1
    %p318 = por %p316, %p317
    %p319 = scmp.ne.s32.totalorder %s311, %s314
    %p320 = scmp.eq.s32.totalorder %s18, 0
    %p321 = por %p319, %p320
    %p322 = scmp.ne.s32.totalorder %s311, %s314
    %p323 = scmp.eq.s32.totalorder %s23, 1
    %p324 = por %p322, %p323
    %p325 = scmp.ne.s32.totalorder %s314, %s315
    %p326 = scmp.eq.s32.totalorder %s23, 0
    %p327 = por %p325, %p326
    %p328 = scmp.ne.s32.totalorder %s314, %s315
    %p329 = scmp.eq.s32.totalorder %s24, 1
    %p330 = por %p328, %p329
    %p332 = scmp.ne.s32.totalorder %s315, %s331
    %p333 = scmp.eq.s32.totalorder %s24, 0
    %p334 = por %p332, %p333
    %p335 = scmp.le.s32.totalorder 1, %s18
    %p336 = scmp.lt.s32.totalorder %s18, 3
    %p337 = pnand %p335, %p336
    %p338 = pneg %p337
    // Predicated region
    $region9: #{comp_trans_tts_forward.1} parent=5 // pred_check
      _
    $region10: #{comp_trans_tts_forward.1} parent=5 // pred_check_branch
      %340 = sbr.rel (%p337) target = $region12
    $region11: #{comp_trans_tts_forward.1} parent=5 // pred_region
      %s341 = ssub.s32 %s18, 1
      // Predicated region
      $region13: #{comp_trans_tts_forward.1} parent=11 // pred_check
        %p342 = pneg %p131
      $region14: #{comp_trans_tts_forward.1} parent=11 // pred_check_branch
        %344 = sbr.rel (%p342) target = $region16
      $region15: #{comp_trans_tts_forward.1} parent=11 // pred_region
        _
      $region16: #{comp_trans_tts_forward.1} parent=11 // pred_fallthru
        _
      // Predicated region
      $region17: #{comp_trans_tts_forward.1} parent=11 // pred_check
        %p345 = pneg %p152
      $region18: #{comp_trans_tts_forward.1} parent=11 // pred_check_branch
        %347 = sbr.rel (%p345) target = $region20
      $region19: #{comp_trans_tts_forward.1} parent=11 // pred_region
        _
      $region20: #{comp_trans_tts_forward.1} parent=11 // pred_fallthru
        _
      // Predicated region
      $region21: #{comp_trans_tts_forward.1} parent=11 // pred_check
        %p348 = pneg %p173
      $region22: #{comp_trans_tts_forward.1} parent=11 // pred_check_branch
        %350 = sbr.rel (%p348) target = $region24
      $region23: #{comp_trans_tts_forward.1} parent=11 // pred_region
        _
      $region24: #{comp_trans_tts_forward.1} parent=11 // pred_fallthru
        _
      // Predicated region
      $region25: #{comp_trans_tts_forward.1} parent=11 // pred_check
        %p351 = pneg %p194
      $region26: #{comp_trans_tts_forward.1} parent=11 // pred_check_branch
        %353 = sbr.rel (%p351) target = $region28
      $region27: #{comp_trans_tts_forward.1} parent=11 // pred_region
        _
      $region28: #{comp_trans_tts_forward.1} parent=11 // pred_fallthru
        _
      // Predicated region
      $region29: #{comp_trans_tts_forward.1} parent=11 // pred_check
        %p354 = pneg %p215
      $region30: #{comp_trans_tts_forward.1} parent=11 // pred_check_branch
        %356 = sbr.rel (%p354) target = $region32
      $region31: #{comp_trans_tts_forward.1} parent=11 // pred_region
        _
      $region32: #{comp_trans_tts_forward.1} parent=11 // pred_fallthru
        _
      // Predicated region
      $region33: #{comp_trans_tts_forward.1} parent=11 // pred_check
        %p357 = pneg %p236
      $region34: #{comp_trans_tts_forward.1} parent=11 // pred_check_branch
        %359 = sbr.rel (%p357) target = $region36
      $region35: #{comp_trans_tts_forward.1} parent=11 // pred_region
        _
      $region36: #{comp_trans_tts_forward.1} parent=11 // pred_fallthru
        _
      // Predicated region
      $region37: #{comp_trans_tts_forward.1} parent=11 // pred_check
        %p360 = pneg %p257
      $region38: #{comp_trans_tts_forward.1} parent=11 // pred_check_branch
        %362 = sbr.rel (%p360) target = $region40
      $region39: #{comp_trans_tts_forward.1} parent=11 // pred_region
        _
      $region40: #{comp_trans_tts_forward.1} parent=11 // pred_fallthru
        _
      // Predicated region
      $region41: #{comp_trans_tts_forward.1} parent=11 // pred_check
        %p363 = pneg %p278
      $region42: #{comp_trans_tts_forward.1} parent=11 // pred_check_branch
        %365 = sbr.rel (%p363) target = $region44
      $region43: #{comp_trans_tts_forward.1} parent=11 // pred_region
        _
      $region44: #{comp_trans_tts_forward.1} parent=11 // pred_fallthru
        _
      // Predicated region
      $region45: #{comp_trans_tts_forward.1} parent=11 // pred_check
        %p366 = pneg %p299
      $region46: #{comp_trans_tts_forward.1} parent=11 // pred_check_branch
        %368 = sbr.rel (%p366) target = $region48
      $region47: #{comp_trans_tts_forward.1} parent=11 // pred_region
        _
      $region48: #{comp_trans_tts_forward.1} parent=11 // pred_fallthru
        _
    $region12: #{comp_trans_tts_forward.1} parent=5 // pred_fallthru
      _
    %p369 = scmp.lt.s32.totalorder %s18, 2
    // Predicated region
    $region49: #{comp_trans_tts_forward.1} parent=5 // pred_check
      %p370 = pneg %p369
    $region50: #{comp_trans_tts_forward.1} parent=5 // pred_check_branch
      %372 = sbr.rel (%p370) target = $region52
    $region51: #{comp_trans_tts_forward.1} parent=5 // pred_region
      // Predicated region
      $region53: #{comp_trans_tts_forward.1} parent=51 // pred_check
        %p373 = pneg %p52
      $region54: #{comp_trans_tts_forward.1} parent=51 // pred_check_branch
        %375 = sbr.rel (%p373) target = $region56
      $region55: #{comp_trans_tts_forward.1} parent=51 // pred_region
        %p376 = scmp.lt.s32.totalorder %s26, 1
        %s377 = scalar_select %p376, %s26, 1
        %p378 = scmp.lt.s32.totalorder %s25, 0
        %s379 = scalar_select %p378, %s25, 0
        %s380 = smul.addr %s379, 2
        %s381 = smul.addr %s377, 2
        %s382 = sadd.s32 %s380, %s381
        %s383 = smul.addr %s382, 4
        %s384 = scalar_lea.vmem %s0, %s383
      $region56: #{comp_trans_tts_forward.1} parent=51 // pred_fallthru
        _
      // Predicated region
      $region57: #{comp_trans_tts_forward.1} parent=51 // pred_check
        %p385 = pneg %p78
      $region58: #{comp_trans_tts_forward.1} parent=51 // pred_check_branch
        %387 = sbr.rel (%p385) target = $region60
      $region59: #{comp_trans_tts_forward.1} parent=51 // pred_region
        %p388 = scmp.lt.s32.totalorder %s26, 1
        %s389 = scalar_select %p388, %s26, 1
        %s390 = smul.addr %s389, 2
        %s391 = scalar_lea.vmem %s1, %s390
      $region60: #{comp_trans_tts_forward.1} parent=51 // pred_fallthru
        _
      // Predicated region
      $region61: #{comp_trans_tts_forward.1} parent=51 // pred_check
        %p392 = pneg %p104
      $region62: #{comp_trans_tts_forward.1} parent=51 // pred_check_branch
        %394 = sbr.rel (%p392) target = $region64
      $region63: #{comp_trans_tts_forward.1} parent=51 // pred_region
        %p395 = scmp.lt.s32.totalorder %s26, 1
        %s396 = scalar_select %p395, %s26, 1
        %s397 = smul.addr %s396, 2
        %s398 = scalar_lea.vmem %s2, %s397
      $region64: #{comp_trans_tts_forward.1} parent=51 // pred_fallthru
        _
    $region52: #{comp_trans_tts_forward.1} parent=5 // pred_fallthru
      _
    %p399 = scmp.le.s32.totalorder 1, %s18
    %p400 = scmp.lt.s32.totalorder %s18, 3
    %p401 = pnand %p399, %p400
    %p402 = pneg %p401
    // Predicated region
    $region65: #{comp_trans_tts_forward.1} parent=5 // pred_check
      _
    $region66: #{comp_trans_tts_forward.1} parent=5 // pred_check_branch
      %404 = sbr.rel (%p401) target = $region68
    $region67: #{comp_trans_tts_forward.1} parent=5 // pred_region
      %s405 = ssub.s32 %s18, 1
      %p406 = scmp.lt.s32.totalorder %s28, 1
      %s407 = scalar_select %p406, %s28, 1
      %p408 = scmp.lt.s32.totalorder %s27, 0
      %s409 = scalar_select %p408, %s27, 0
      %s410 = smul.addr %s409, 2
      %s411 = smul.addr %s407, 2
      %s412 = sadd.s32 %s410, %s411
      %s413 = smul.addr %s412, 4
      %s414 = scalar_lea.vmem %s0, %s413
      %p415 = pneg %p58
      %p416 = pneg %p55
      %p417 = scmp.lt.s32.totalorder %s28, 1
      %s418 = scalar_select %p417, %s28, 1
      %s419 = smul.addr %s418, 2
      %s420 = scalar_lea.vmem %s1, %s419
      %p421 = pneg %p84
      %p422 = pneg %p81
      %p423 = scmp.lt.s32.totalorder %s28, 1
      %s424 = scalar_select %p423, %s28, 1
      %s425 = smul.addr %s424, 2
      %s426 = scalar_lea.vmem %s2, %s425
      %p427 = pneg %p110
      %p428 = pneg %p107
      %p429 = pneg %p131
      %p430 = pneg %p128
      %p431 = pneg %p152
      %p432 = pneg %p149
      %p433 = pneg %p173
      %p434 = pneg %p170
      %p435 = pneg %p194
      %p436 = pneg %p191
      %p437 = pneg %p215
      %p438 = pneg %p212
      %p439 = pneg %p236
      %p440 = pneg %p233
      %p441 = pneg %p257
      %p442 = pneg %p254
      %p443 = pneg %p278
      %p444 = pneg %p275
      %p445 = pneg %p299
      %p446 = pneg %p296
      %p447 = pneg %p327
      %p448 = pneg %p324
      %p449 = scmp.lt.s32.totalorder %s28, 1
      %s450 = scalar_select %p449, %s28, 1
      %p451 = scmp.lt.s32.totalorder %s27, 0
      %s452 = scalar_select %p451, %s27, 0
      %s453 = smul.addr %s452, 5
      %s454 = smul.addr %s450, 5
      %s455 = sadd.s32 %s453, %s454
      %s456 = smul.addr %s455, 4
      %s457 = scalar_lea.vmem %s12, %s456
      %p458 = scmp.lt.s32.totalorder %s28, 1
      %s459 = scalar_select %p458, %s28, 1
      %p460 = scmp.lt.s32.totalorder %s27, 0
      %s461 = scalar_select %p460, %s27, 0
      %s462 = smul.addr %s461, 2
      %s463 = smul.addr %s459, 2
      %s464 = sadd.s32 %s462, %s463
      %s465 = smul.addr %s464, 4
      %s466 = scalar_lea.vmem %s0, %s465
      %p467 = scmp.lt.s32.totalorder %s28, 1
      %s468 = scalar_select %p467, %s28, 1
      %s469 = smul.addr %s468, 2
      %s470 = scalar_lea.vmem %s1, %s469
      %p471 = scmp.lt.s32.totalorder %s28, 1
      %s472 = scalar_select %p471, %s28, 1
      %s473 = smul.addr %s472, 2
      %s474 = scalar_lea.vmem %s2, %s473
      %p475 = scmp.lt.s32.totalorder %s28, 1
      %s476 = scalar_select %p475, %s28, 1
      %p477 = scmp.lt.s32.totalorder %s27, 0
      %s478 = scalar_select %p477, %s27, 0
      %s479 = smul.addr %s478, 5
      %s480 = smul.addr %s476, 5
      %s481 = sadd.s32 %s479, %s480
      %s482 = smul.addr %s481, 4
      %s483 = scalar_lea.vmem %s12, %s482
      %v485 = vld [vmem:[%s466] sm:$0xff]
      %v486 = vld [vmem:[%s3] sm:$0x3]
      %v487 = vld [vmem:[%s4] sm:$0x3]
      %v488 = vunpack.c.l.bf16 %v485
      %v489 = vunpack.c.h.bf16 %v485
      %v490 = vadd.f32 %v488, %v489
      %491 = vadd.xlane.f32.xlu0 %v490
      %v492 = vpop.xlane.xlu0 %491
      %v493 = vrcp.pop 256.0
      %v494 = vmul.f32 %v492, %v493
      %v495 = vsub.f32 %v488, %v494
      %v496 = vsub.f32 %v489, %v494
      %v497 = vmul.f32 %v495, %v495
      %v498 = vmul.f32 %v496, %v496
      %v499 = vadd.f32 %v497, %v498
      %500 = vadd.xlane.f32.xlu0 %v499
      %v501 = vpop.xlane.xlu0 %500
      %v502 = vmul.f32 %v501, %v493
      %v503 = vadd.f32 %v502, 1e-05
      %v504 = vrsqrt.pop %v503
      %v505 = vmul.f32 %v495, %v504
      %v506 = vmul.f32 %v496, %v504
      %v508 = vlaneseq
      %v509 = vshrl.u32 %v508, 7
      %v510 = vsub.s32 0, %v509
      %v511 = vrot.slane %v486, %v510
      %v512 = vlaneseq
      %v513 = vshrl.u32 %v512, 7
      %v514 = vsub.s32 1, %v513
      %v515 = vrot.slane %v486, %v514
      %v518 = vmul.f32 %v505, %v511
      %v519 = vmul.f32 %v506, %v515
      %v521 = vlaneseq
      %v522 = vshrl.u32 %v521, 7
      %v523 = vsub.s32 0, %v522
      %v524 = vrot.slane %v487, %v523
      %v525 = vlaneseq
      %v526 = vshrl.u32 %v525, 7
      %v527 = vsub.s32 1, %v526
      %v528 = vrot.slane %v487, %v527
      %v531 = vadd.f32 %v518, %v524
      %v532 = vadd.f32 %v519, %v528
      %v533 = vpack.c.bf16 %v531, %v531
      %v534 = vpack.c.bf16 %v532, %v532
      %v535 = vld [vmem:[%s5] sm:$0xff]
      %v536 = vld [vmem:[%s5 + $0x8] sm:$0xff]
      %v537 = vld [vmem:[%s5 + $0x10] sm:$0xff]
      %v538 = vld [vmem:[%s5 + $0x18] sm:$0xff]
      %v539 = vld [vmem:[%s5 + $0x20] sm:$0xff]
      %v540 = vld [vmem:[%s5 + $0x28] sm:$0xff]
      %v541 = vld [vmem:[%s5 + $0x30] sm:$0xff]
      %v542 = vld [vmem:[%s5 + $0x38] sm:$0xff]
      %v543 = vld [vmem:[%s5 + $0x40] sm:$0xff]
      %v544 = vld [vmem:[%s5 + $0x48] sm:$0xff]
      %v545 = vld [vmem:[%s5 + $0x50] sm:$0xff]
      %v546 = vld [vmem:[%s5 + $0x58] sm:$0xff]
      %v547 = vld [vmem:[%s5 + $0x60] sm:$0xff]
      %v548 = vld [vmem:[%s5 + $0x68] sm:$0xff]
      %v549 = vld [vmem:[%s5 + $0x70] sm:$0xff]
      %v550 = vld [vmem:[%s5 + $0x78] sm:$0xff]
      %v551 = vld [vmem:[%s5 + $0x80] sm:$0xff]
      %v552 = vld [vmem:[%s5 + $0x88] sm:$0xff]
      %v553 = vld [vmem:[%s5 + $0x90] sm:$0xff]
      %v554 = vld [vmem:[%s5 + $0x98] sm:$0xff]
      %v555 = vld [vmem:[%s5 + $0xa0] sm:$0xff]
      %v556 = vld [vmem:[%s5 + $0xa8] sm:$0xff]
      %v557 = vld [vmem:[%s5 + $0xb0] sm:$0xff]
      %v558 = vld [vmem:[%s5 + $0xb8] sm:$0xff]
      %v559 = vld [vmem:[%s5 + $0xc0] sm:$0xff]
      %v560 = vld [vmem:[%s5 + $0xc8] sm:$0xff]
      %v561 = vld [vmem:[%s5 + $0xd0] sm:$0xff]
      %v562 = vld [vmem:[%s5 + $0xd8] sm:$0xff]
      %v563 = vld [vmem:[%s5 + $0xe0] sm:$0xff]
      %v564 = vld [vmem:[%s5 + $0xe8] sm:$0xff]
      %v565 = vld [vmem:[%s5 + $0xf0] sm:$0xff]
      %v566 = vld [vmem:[%s5 + $0xf8] sm:$0xff]
      %v567 = vld [vmem:[%s6] sm:$0xff]
      %v568 = vld [vmem:[%s6 + $0x8] sm:$0xff]
      %v569 = vld [vmem:[%s6 + $0x10] sm:$0xff]
      %v570 = vld [vmem:[%s6 + $0x18] sm:$0xff]
      %v571 = vld [vmem:[%s6 + $0x20] sm:$0xff]
      %v572 = vld [vmem:[%s6 + $0x28] sm:$0xff]
      %v573 = vld [vmem:[%s6 + $0x30] sm:$0xff]
      %v574 = vld [vmem:[%s6 + $0x38] sm:$0xff]
      %v575 = vld [vmem:[%s6 + $0x40] sm:$0xff]
      %v576 = vld [vmem:[%s6 + $0x48] sm:$0xff]
      %v577 = vld [vmem:[%s6 + $0x50] sm:$0xff]
      %v578 = vld [vmem:[%s6 + $0x58] sm:$0xff]
      %v579 = vld [vmem:[%s6 + $0x60] sm:$0xff]
      %v580 = vld [vmem:[%s6 + $0x68] sm:$0xff]
      %v581 = vld [vmem:[%s6 + $0x70] sm:$0xff]
      %v582 = vld [vmem:[%s6 + $0x78] sm:$0xff]
      %v583 = vld [vmem:[%s6 + $0x80] sm:$0xff]
      %v584 = vld [vmem:[%s6 + $0x88] sm:$0xff]
      %v585 = vld [vmem:[%s6 + $0x90] sm:$0xff]
      %v586 = vld [vmem:[%s6 + $0x98] sm:$0xff]
      %v587 = vld [vmem:[%s6 + $0xa0] sm:$0xff]
      %v588 = vld [vmem:[%s6 + $0xa8] sm:$0xff]
      %v589 = vld [vmem:[%s6 + $0xb0] sm:$0xff]
      %v590 = vld [vmem:[%s6 + $0xb8] sm:$0xff]
      %v591 = vld [vmem:[%s6 + $0xc0] sm:$0xff]
      %v592 = vld [vmem:[%s6 + $0xc8] sm:$0xff]
      %v593 = vld [vmem:[%s6 + $0xd0] sm:$0xff]
      %v594 = vld [vmem:[%s6 + $0xd8] sm:$0xff]
      %v595 = vld [vmem:[%s6 + $0xe0] sm:$0xff]
      %v596 = vld [vmem:[%s6 + $0xe8] sm:$0xff]
      %v597 = vld [vmem:[%s6 + $0xf0] sm:$0xff]
      %v598 = vld [vmem:[%s6 + $0xf8] sm:$0xff]
      %v600 = vunpack.c.l.b16 %v485
      %v601 = vunpack.c.h.b16 %v485
      %v602 = vpack.c.b16 %v600, %v600
      %v603 = vpack.c.b16 %v601, %v601
      %v638 = vunpack.c.l.b16 %v567
      %v639 = vunpack.c.h.b16 %v567
      %v640 = vunpack.c.l.b16 %v568
      %v641 = vunpack.c.h.b16 %v568
      %v642 = vunpack.c.l.b16 %v569
      %v643 = vunpack.c.h.b16 %v569
      %v644 = vunpack.c.l.b16 %v570
      %v645 = vunpack.c.h.b16 %v570
      %v646 = vunpack.c.l.b16 %v571
      %v647 = vunpack.c.h.b16 %v571
      %v648 = vunpack.c.l.b16 %v572
      %v649 = vunpack.c.h.b16 %v572
      %v650 = vunpack.c.l.b16 %v573
      %v651 = vunpack.c.h.b16 %v573
      %v652 = vunpack.c.l.b16 %v574
      %v653 = vunpack.c.h.b16 %v574
      %v654 = vunpack.c.l.b16 %v575
      %v655 = vunpack.c.h.b16 %v575
      %v656 = vunpack.c.l.b16 %v576
      %v657 = vunpack.c.h.b16 %v576
      %v658 = vunpack.c.l.b16 %v577
      %v659 = vunpack.c.h.b16 %v577
      %v660 = vunpack.c.l.b16 %v578
      %v661 = vunpack.c.h.b16 %v578
      %v662 = vunpack.c.l.b16 %v579
      %v663 = vunpack.c.h.b16 %v579
      %v664 = vunpack.c.l.b16 %v580
      %v665 = vunpack.c.h.b16 %v580
      %v666 = vunpack.c.l.b16 %v581
      %v667 = vunpack.c.h.b16 %v581
      %v668 = vunpack.c.l.b16 %v582
      %v669 = vunpack.c.h.b16 %v582
      %v670 = vunpack.c.l.b16 %v583
      %v671 = vunpack.c.h.b16 %v583
      %v672 = vunpack.c.l.b16 %v584
      %v673 = vunpack.c.h.b16 %v584
      %v674 = vunpack.c.l.b16 %v585
      %v675 = vunpack.c.h.b16 %v585
      %v676 = vunpack.c.l.b16 %v586
      %v677 = vunpack.c.h.b16 %v586
      %v678 = vunpack.c.l.b16 %v587
      %v679 = vunpack.c.h.b16 %v587
      %v680 = vunpack.c.l.b16 %v588
      %v681 = vunpack.c.h.b16 %v588
      %v682 = vunpack.c.l.b16 %v589
      %v683 = vunpack.c.h.b16 %v589
      %v684 = vunpack.c.l.b16 %v590
      %v685 = vunpack.c.h.b16 %v590
      %v686 = vunpack.c.l.b16 %v591
      %v687 = vunpack.c.h.b16 %v591
      %v688 = vunpack.c.l.b16 %v592
      %v689 = vunpack.c.h.b16 %v592
      %v690 = vunpack.c.l.b16 %v593
      %v691 = vunpack.c.h.b16 %v593
      %v692 = vunpack.c.l.b16 %v594
      %v693 = vunpack.c.h.b16 %v594
      %v694 = vunpack.c.l.b16 %v595
      %v695 = vunpack.c.h.b16 %v595
      %v696 = vunpack.c.l.b16 %v596
      %v697 = vunpack.c.h.b16 %v596
      %v698 = vunpack.c.l.b16 %v597
      %v699 = vunpack.c.h.b16 %v597
      %v700 = vunpack.c.l.b16 %v598
      %v701 = vunpack.c.h.b16 %v598
      %v702 = vpack.c.b16 %v640, %v638
      %v703 = vpack.c.b16 %v641, %v639
      %v704 = vpack.c.b16 %v644, %v642
      %v705 = vpack.c.b16 %v645, %v643
      %v706 = vpack.c.b16 %v648, %v646
      %v707 = vpack.c.b16 %v649, %v647
      %v708 = vpack.c.b16 %v652, %v650
      %v709 = vpack.c.b16 %v653, %v651
      %v710 = vpack.c.b16 %v656, %v654
      %v711 = vpack.c.b16 %v657, %v655
      %v712 = vpack.c.b16 %v660, %v658
      %v713 = vpack.c.b16 %v661, %v659
      %v714 = vpack.c.b16 %v664, %v662
      %v715 = vpack.c.b16 %v665, %v663
      %v716 = vpack.c.b16 %v668, %v666
      %v717 = vpack.c.b16 %v669, %v667
      %v718 = vpack.c.b16 %v672, %v670
      %v719 = vpack.c.b16 %v673, %v671
      %v720 = vpack.c.b16 %v676, %v674
      %v721 = vpack.c.b16 %v677, %v675
      %v722 = vpack.c.b16 %v680, %v678
      %v723 = vpack.c.b16 %v681, %v679
      %v724 = vpack.c.b16 %v684, %v682
      %v725 = vpack.c.b16 %v685, %v683
      %v726 = vpack.c.b16 %v688, %v686
      %v727 = vpack.c.b16 %v689, %v687
      %v728 = vpack.c.b16 %v692, %v690
      %v729 = vpack.c.b16 %v693, %v691
      %v730 = vpack.c.b16 %v696, %v694
      %v731 = vpack.c.b16 %v697, %v695
      %v732 = vpack.c.b16 %v700, %v698
      %v733 = vpack.c.b16 %v701, %v699
      %766 = vmatprep.subr.bf16.mxu0 %v703
      %767 = vmatpush1.bf16.msra.mxu0 %v702
      %768 = vmatprep.subr.bf16.mxu0 %v705
      %769 = vmatpush1.bf16.msra.mxu0 %v704
      %770 = vmatprep.subr.bf16.mxu0 %v707
      %771 = vmatpush1.bf16.msra.mxu0 %v706
      %772 = vmatprep.subr.bf16.mxu0 %v709
      %773 = vmatpush1.bf16.msra.mxu0 %v708
      %774 = vmatprep.subr.bf16.mxu0 %v711
      %775 = vmatpush1.bf16.msra.mxu0 %v710
      %776 = vmatprep.subr.bf16.mxu0 %v713
      %777 = vmatpush1.bf16.msra.mxu0 %v712
      %778 = vmatprep.subr.bf16.mxu0 %v715
      %779 = vmatpush1.bf16.msra.mxu0 %v714
      %780 = vmatprep.subr.bf16.mxu0 %v717
      %781 = vmatpush1.bf16.msra.mxu0 %v716
      %782 = vmatprep.subr.bf16.mxu0 %v719
      %783 = vmatpush1.bf16.msra.mxu0 %v718
      %784 = vmatprep.subr.bf16.mxu0 %v721
      %785 = vmatpush1.bf16.msra.mxu0 %v720
      %786 = vmatprep.subr.bf16.mxu0 %v723
      %787 = vmatpush1.bf16.msra.mxu0 %v722
      %788 = vmatprep.subr.bf16.mxu0 %v725
      %789 = vmatpush1.bf16.msra.mxu0 %v724
      %790 = vmatprep.subr.bf16.mxu0 %v727
      %791 = vmatpush1.bf16.msra.mxu0 %v726
      %792 = vmatprep.subr.bf16.mxu0 %v729
      %793 = vmatpush1.bf16.msra.mxu0 %v728
      %794 = vmatprep.subr.bf16.mxu0 %v731
      %795 = vmatpush1.bf16.msra.mxu0 %v730
      %796 = vmatprep.subr.bf16.mxu0 %v733
      %797 = vmatpush1.bf16.msra.mxu0 %v732
      %798 = vmatprep.mubr.bf16.mxu0 %v603
      %799 = vmatmul.mubr.bf16.gmra.mrb[0].mxu0 %v602
      %v800 = vpop.f32.mrb[0].mxu0
      %v801 = vadd.f32 0.0, %v800
      %v802 = vpop.f32.mrb[0].mxu0
      %v803 = vadd.f32 0.0, %v802
      %v804 = vpop.f32.mrb[0].mxu0
      %v805 = vpop.f32.mrb[0].mxu0
      %806 = vdwg.mxu0
      %v839 = vunpack.c.l.b16 %v535
      %v840 = vunpack.c.h.b16 %v535
      %v841 = vunpack.c.l.b16 %v536
      %v842 = vunpack.c.h.b16 %v536
      %v843 = vunpack.c.l.b16 %v537
      %v844 = vunpack.c.h.b16 %v537
      %v845 = vunpack.c.l.b16 %v538
      %v846 = vunpack.c.h.b16 %v538
      %v847 = vunpack.c.l.b16 %v539
      %v848 = vunpack.c.h.b16 %v539
      %v849 = vunpack.c.l.b16 %v540
      %v850 = vunpack.c.h.b16 %v540
      %v851 = vunpack.c.l.b16 %v541
      %v852 = vunpack.c.h.b16 %v541
      %v853 = vunpack.c.l.b16 %v542
      %v854 = vunpack.c.h.b16 %v542
      %v855 = vunpack.c.l.b16 %v543
      %v856 = vunpack.c.h.b16 %v543
      %v857 = vunpack.c.l.b16 %v544
      %v858 = vunpack.c.h.b16 %v544
      %v859 = vunpack.c.l.b16 %v545
      %v860 = vunpack.c.h.b16 %v545
      %v861 = vunpack.c.l.b16 %v546
      %v862 = vunpack.c.h.b16 %v546
      %v863 = vunpack.c.l.b16 %v547
      %v864 = vunpack.c.h.b16 %v547
      %v865 = vunpack.c.l.b16 %v548
      %v866 = vunpack.c.h.b16 %v548
      %v867 = vunpack.c.l.b16 %v549
      %v868 = vunpack.c.h.b16 %v549
      %v869 = vunpack.c.l.b16 %v550
      %v870 = vunpack.c.h.b16 %v550
      %v871 = vunpack.c.l.b16 %v551
      %v872 = vunpack.c.h.b16 %v551
      %v873 = vunpack.c.l.b16 %v552
      %v874 = vunpack.c.h.b16 %v552
      %v875 = vunpack.c.l.b16 %v553
      %v876 = vunpack.c.h.b16 %v553
      %v877 = vunpack.c.l.b16 %v554
      %v878 = vunpack.c.h.b16 %v554
      %v879 = vunpack.c.l.b16 %v555
      %v880 = vunpack.c.h.b16 %v555
      %v881 = vunpack.c.l.b16 %v556
      %v882 = vunpack.c.h.b16 %v556
      %v883 = vunpack.c.l.b16 %v557
      %v884 = vunpack.c.h.b16 %v557
      %v885 = vunpack.c.l.b16 %v558
      %v886 = vunpack.c.h.b16 %v558
      %v887 = vunpack.c.l.b16 %v559
      %v888 = vunpack.c.h.b16 %v559
      %v889 = vunpack.c.l.b16 %v560
      %v890 = vunpack.c.h.b16 %v560
      %v891 = vunpack.c.l.b16 %v561
      %v892 = vunpack.c.h.b16 %v561
      %v893 = vunpack.c.l.b16 %v562
      %v894 = vunpack.c.h.b16 %v562
      %v895 = vunpack.c.l.b16 %v563
      %v896 = vunpack.c.h.b16 %v563
      %v897 = vunpack.c.l.b16 %v564
      %v898 = vunpack.c.h.b16 %v564
      %v899 = vunpack.c.l.b16 %v565
      %v900 = vunpack.c.h.b16 %v565
      %v901 = vunpack.c.l.b16 %v566
      %v902 = vunpack.c.h.b16 %v566
      %v903 = vpack.c.b16 %v841, %v839
      %v904 = vpack.c.b16 %v842, %v840
      %v905 = vpack.c.b16 %v845, %v843
      %v906 = vpack.c.b16 %v846, %v844
      %v907 = vpack.c.b16 %v849, %v847
      %v908 = vpack.c.b16 %v850, %v848
      %v909 = vpack.c.b16 %v853, %v851
      %v910 = vpack.c.b16 %v854, %v852
      %v911 = vpack.c.b16 %v857, %v855
      %v912 = vpack.c.b16 %v858, %v856
      %v913 = vpack.c.b16 %v861, %v859
      %v914 = vpack.c.b16 %v862, %v860
      %v915 = vpack.c.b16 %v865, %v863
      %v916 = vpack.c.b16 %v866, %v864
      %v917 = vpack.c.b16 %v869, %v867
      %v918 = vpack.c.b16 %v870, %v868
      %v919 = vpack.c.b16 %v873, %v871
      %v920 = vpack.c.b16 %v874, %v872
      %v921 = vpack.c.b16 %v877, %v875
      %v922 = vpack.c.b16 %v878, %v876
      %v923 = vpack.c.b16 %v881, %v879
      %v924 = vpack.c.b16 %v882, %v880
      %v925 = vpack.c.b16 %v885, %v883
      %v926 = vpack.c.b16 %v886, %v884
      %v927 = vpack.c.b16 %v889, %v887
      %v928 = vpack.c.b16 %v890, %v888
      %v929 = vpack.c.b16 %v893, %v891
      %v930 = vpack.c.b16 %v894, %v892
      %v931 = vpack.c.b16 %v897, %v895
      %v932 = vpack.c.b16 %v898, %v896
      %v933 = vpack.c.b16 %v901, %v899
      %v934 = vpack.c.b16 %v902, %v900
      %967 = vmatprep.subr.bf16.mxu0 %v904
      %968 = vmatpush1.bf16.msra.mxu0 %v903
      %969 = vmatprep.subr.bf16.mxu0 %v906
      %970 = vmatpush1.bf16.msra.mxu0 %v905
      %971 = vmatprep.subr.bf16.mxu0 %v908
      %972 = vmatpush1.bf16.msra.mxu0 %v907
      %973 = vmatprep.subr.bf16.mxu0 %v910
      %974 = vmatpush1.bf16.msra.mxu0 %v909
      %975 = vmatprep.subr.bf16.mxu0 %v912
      %976 = vmatpush1.bf16.msra.mxu0 %v911
      %977 = vmatprep.subr.bf16.mxu0 %v914
      %978 = vmatpush1.bf16.msra.mxu0 %v913
      %979 = vmatprep.subr.bf16.mxu0 %v916
      %980 = vmatpush1.bf16.msra.mxu0 %v915
      %981 = vmatprep.subr.bf16.mxu0 %v918
      %982 = vmatpush1.bf16.msra.mxu0 %v917
      %983 = vmatprep.subr.bf16.mxu0 %v920
      %984 = vmatpush1.bf16.msra.mxu0 %v919
      %985 = vmatprep.subr.bf16.mxu0 %v922
      %986 = vmatpush1.bf16.msra.mxu0 %v921
      %987 = vmatprep.subr.bf16.mxu0 %v924
      %988 = vmatpush1.bf16.msra.mxu0 %v923
      %989 = vmatprep.subr.bf16.mxu0 %v926
      %990 = vmatpush1.bf16.msra.mxu0 %v925
      %991 = vmatprep.subr.bf16.mxu0 %v928
      %992 = vmatpush1.bf16.msra.mxu0 %v927
      %993 = vmatprep.subr.bf16.mxu0 %v930
      %994 = vmatpush1.bf16.msra.mxu0 %v929
      %995 = vmatprep.subr.bf16.mxu0 %v932
      %996 = vmatpush1.bf16.msra.mxu0 %v931
      %997 = vmatprep.subr.bf16.mxu0 %v934
      %998 = vmatpush1.bf16.msra.mxu0 %v933
      %999 = vmatprep.mubr.bf16.mxu0 %v534
      %1000 = vmatmul.mubr.bf16.gmra.mrb[0].mxu0 %v533
      %v1001 = vpop.f32.mrb[0].mxu0
      %v1002 = vadd.f32 %v801, %v1001
      %v1003 = vpop.f32.mrb[0].mxu0
      %v1004 = vadd.f32 %v803, %v1003
      %v1005 = vpop.f32.mrb[0].mxu0
      %v1006 = vpop.f32.mrb[0].mxu0
      %1007 = vdwg.mxu0
      %v1008 = vld [vmem:[%s470] sm:$0x3]
      %v1010 = vlaneseq
      %v1011 = vshrl.u32 %v1010, 7
      %v1012 = vsub.s32 0, %v1011
      %v1013 = vrot.slane %v1008, %v1012
      %v1014 = vlaneseq
      %v1015 = vshrl.u32 %v1014, 7
      %v1016 = vsub.s32 1, %v1015
      %v1017 = vrot.slane %v1008, %v1016
      %v1020 = vadd.f32 %v1002, %v1013
      %v1021 = vadd.f32 %v1004, %v1017
      %v1022 = vld [vmem:[%s7] sm:$0x3]
      %v1024 = vlaneseq
      %v1025 = vshrl.u32 %v1024, 7
      %v1026 = vsub.s32 0, %v1025
      %v1027 = vrot.slane %v1022, %v1026
      %v1028 = vlaneseq
      %v1029 = vshrl.u32 %v1028, 7
      %v1030 = vsub.s32 1, %v1029
      %v1031 = vrot.slane %v1022, %v1030
      %v1034 = vadd.f32 %v1020, %v1027
      %v1035 = vadd.f32 %v1021, %v1031
      %v1036 = vld [vmem:[%s8] sm:$0x3]
      %v1037 = vld [vmem:[%s9] sm:$0x3]
      %v1038 = vadd.f32 %v1034, %v1035
      %1039 = vadd.xlane.f32.xlu0 %v1038
      %v1040 = vpop.xlane.xlu0 %1039
      %v1041 = vmul.f32 %v1040, %v493
      %v1042 = vsub.f32 %v1034, %v1041
      %v1043 = vsub.f32 %v1035, %v1041
      %v1044 = vmul.f32 %v1042, %v1042
      %v1045 = vmul.f32 %v1043, %v1043
      %v1046 = vadd.f32 %v1044, %v1045
      %1047 = vadd.xlane.f32.xlu0 %v1046
      %v1048 = vpop.xlane.xlu0 %1047
      %v1049 = vmul.f32 %v1048, %v493
      %v1050 = vadd.f32 %v1049, 1e-05
      %v1051 = vrsqrt.pop %v1050
      %v1052 = vmul.f32 %v1042, %v1051
      %v1053 = vmul.f32 %v1043, %v1051
      %v1055 = vlaneseq
      %v1056 = vshrl.u32 %v1055, 7
      %v1057 = vsub.s32 0, %v1056
      %v1058 = vrot.slane %v1036, %v1057
      %v1059 = vlaneseq
      %v1060 = vshrl.u32 %v1059, 7
      %v1061 = vsub.s32 1, %v1060
      %v1062 = vrot.slane %v1036, %v1061
      %v1065 = vmul.f32 %v1052, %v1058
      %v1066 = vmul.f32 %v1053, %v1062
      %v1068 = vlaneseq
      %v1069 = vshrl.u32 %v1068, 7
      %v1070 = vsub.s32 0, %v1069
      %v1071 = vrot.slane %v1037, %v1070
      %v1072 = vlaneseq
      %v1073 = vshrl.u32 %v1072, 7
      %v1074 = vsub.s32 1, %v1073
      %v1075 = vrot.slane %v1037, %v1074
      %v1078 = vadd.f32 %v1065, %v1071
      %v1079 = vadd.f32 %v1066, %v1075
      %v1080 = vld [vmem:[%s474] sm:$0x3]
      %v1082 = vlaneseq
      %v1083 = vshrl.u32 %v1082, 7
      %v1084 = vsub.s32 0, %v1083
      %v1085 = vrot.slane %v1080, %v1084
      %v1086 = vlaneseq
      %v1087 = vshrl.u32 %v1086, 7
      %v1088 = vsub.s32 1, %v1087
      %v1089 = vrot.slane %v1080, %v1088
      %v1092 = vadd.f32 %v1078, %v1085
      %v1093 = vadd.f32 %v1079, %v1089
      %v1094 = vpack.c.bf16 %v1092, %v1092
      %v1095 = vpack.c.bf16 %v1093, %v1093
      %v1096 = vld [vmem:[%s10] sm:$0xff]
      %v1097 = vld [vmem:[%s10 + $0x8] sm:$0xff]
      %v1098 = vld [vmem:[%s10 + $0x10] sm:$0xf]
      %v1099 = vld [vmem:[%s10 + $0x14] sm:$0xff]
      %v1100 = vld [vmem:[%s10 + $0x1c] sm:$0xff]
      %v1101 = vld [vmem:[%s10 + $0x24] sm:$0xf]
      %v1102 = vld [vmem:[%s10 + $0x28] sm:$0xff]
      %v1103 = vld [vmem:[%s10 + $0x30] sm:$0xff]
      %v1104 = vld [vmem:[%s10 + $0x38] sm:$0xf]
      %v1105 = vld [vmem:[%s10 + $0x3c] sm:$0xff]
      %v1106 = vld [vmem:[%s10 + $0x44] sm:$0xff]
      %v1107 = vld [vmem:[%s10 + $0x4c] sm:$0xf]
      %v1108 = vld [vmem:[%s10 + $0x50] sm:$0xff]
      %v1109 = vld [vmem:[%s10 + $0x58] sm:$0xff]
      %v1110 = vld [vmem:[%s10 + $0x60] sm:$0xf]
      %v1111 = vld [vmem:[%s10 + $0x64] sm:$0xff]
      %v1112 = vld [vmem:[%s10 + $0x6c] sm:$0xff]
      %v1113 = vld [vmem:[%s10 + $0x74] sm:$0xf]
      %v1114 = vld [vmem:[%s10 + $0x78] sm:$0xff]
      %v1115 = vld [vmem:[%s10 + $0x80] sm:$0xff]
      %v1116 = vld [vmem:[%s10 + $0x88] sm:$0xf]
      %v1117 = vld [vmem:[%s10 + $0x8c] sm:$0xff]
      %v1118 = vld [vmem:[%s10 + $0x94] sm:$0xff]
      %v1119 = vld [vmem:[%s10 + $0x9c] sm:$0xf]
      %v1120 = vld [vmem:[%s10 + $0xa0] sm:$0xff]
      %v1121 = vld [vmem:[%s10 + $0xa8] sm:$0xff]
      %v1122 = vld [vmem:[%s10 + $0xb0] sm:$0xf]
      %v1123 = vld [vmem:[%s10 + $0xb4] sm:$0xff]
      %v1124 = vld [vmem:[%s10 + $0xbc] sm:$0xff]
      %v1125 = vld [vmem:[%s10 + $0xc4] sm:$0xf]
      %v1126 = vld [vmem:[%s10 + $0xc8] sm:$0xff]
      %v1127 = vld [vmem:[%s10 + $0xd0] sm:$0xff]
      %v1128 = vld [vmem:[%s10 + $0xd8] sm:$0xf]
      %v1129 = vld [vmem:[%s10 + $0xdc] sm:$0xff]
      %v1130 = vld [vmem:[%s10 + $0xe4] sm:$0xff]
      %v1131 = vld [vmem:[%s10 + $0xec] sm:$0xf]
      %v1132 = vld [vmem:[%s10 + $0xf0] sm:$0xff]
      %v1133 = vld [vmem:[%s10 + $0xf8] sm:$0xff]
      %v1134 = vld [vmem:[%s10 + $0x100] sm:$0xf]
      %v1135 = vld [vmem:[%s10 + $0x104] sm:$0xff]
      %v1136 = vld [vmem:[%s10 + $0x10c] sm:$0xff]
      %v1137 = vld [vmem:[%s10 + $0x114] sm:$0xf]
      %v1138 = vld [vmem:[%s10 + $0x118] sm:$0xff]
      %v1139 = vld [vmem:[%s10 + $0x120] sm:$0xff]
      %v1140 = vld [vmem:[%s10 + $0x128] sm:$0xf]
      %v1141 = vld [vmem:[%s10 + $0x12c] sm:$0xff]
      %v1142 = vld [vmem:[%s10 + $0x134] sm:$0xff]
      %v1143 = vld [vmem:[%s10 + $0x13c] sm:$0xf]
      %v1144 = vld [vmem:[%s10 + $0x140] sm:$0xff]
      %v1145 = vld [vmem:[%s10 + $0x148] sm:$0xff]
      %v1146 = vld [vmem:[%s10 + $0x150] sm:$0xf]
      %v1147 = vld [vmem:[%s10 + $0x154] sm:$0xff]
      %v1148 = vld [vmem:[%s10 + $0x15c] sm:$0xff]
      %v1149 = vld [vmem:[%s10 + $0x164] sm:$0xf]
      %v1150 = vld [vmem:[%s10 + $0x168] sm:$0xff]
      %v1151 = vld [vmem:[%s10 + $0x170] sm:$0xff]
      %v1152 = vld [vmem:[%s10 + $0x178] sm:$0xf]
      %v1153 = vld [vmem:[%s10 + $0x17c] sm:$0xff]
      %v1154 = vld [vmem:[%s10 + $0x184] sm:$0xff]
      %v1155 = vld [vmem:[%s10 + $0x18c] sm:$0xf]
      %v1156 = vld [vmem:[%s10 + $0x190] sm:$0xff]
      %v1157 = vld [vmem:[%s10 + $0x198] sm:$0xff]
      %v1158 = vld [vmem:[%s10 + $0x1a0] sm:$0xf]
      %v1159 = vld [vmem:[%s10 + $0x1a4] sm:$0xff]
      %v1160 = vld [vmem:[%s10 + $0x1ac] sm:$0xff]
      %v1161 = vld [vmem:[%s10 + $0x1b4] sm:$0xf]
      %v1162 = vld [vmem:[%s10 + $0x1b8] sm:$0xff]
      %v1163 = vld [vmem:[%s10 + $0x1c0] sm:$0xff]
      %v1164 = vld [vmem:[%s10 + $0x1c8] sm:$0xf]
      %v1165 = vld [vmem:[%s10 + $0x1cc] sm:$0xff]
      %v1166 = vld [vmem:[%s10 + $0x1d4] sm:$0xff]
      %v1167 = vld [vmem:[%s10 + $0x1dc] sm:$0xf]
      %v1168 = vld [vmem:[%s10 + $0x1e0] sm:$0xff]
      %v1169 = vld [vmem:[%s10 + $0x1e8] sm:$0xff]
      %v1170 = vld [vmem:[%s10 + $0x1f0] sm:$0xf]
      %v1171 = vld [vmem:[%s10 + $0x1f4] sm:$0xff]
      %v1172 = vld [vmem:[%s10 + $0x1fc] sm:$0xff]
      %v1173 = vld [vmem:[%s10 + $0x204] sm:$0xf]
      %v1174 = vld [vmem:[%s10 + $0x208] sm:$0xff]
      %v1175 = vld [vmem:[%s10 + $0x210] sm:$0xff]
      %v1176 = vld [vmem:[%s10 + $0x218] sm:$0xf]
      %v1177 = vld [vmem:[%s10 + $0x21c] sm:$0xff]
      %v1178 = vld [vmem:[%s10 + $0x224] sm:$0xff]
      %v1179 = vld [vmem:[%s10 + $0x22c] sm:$0xf]
      %v1180 = vld [vmem:[%s10 + $0x230] sm:$0xff]
      %v1181 = vld [vmem:[%s10 + $0x238] sm:$0xff]
      %v1182 = vld [vmem:[%s10 + $0x240] sm:$0xf]
      %v1183 = vld [vmem:[%s10 + $0x244] sm:$0xff]
      %v1184 = vld [vmem:[%s10 + $0x24c] sm:$0xff]
      %v1185 = vld [vmem:[%s10 + $0x254] sm:$0xf]
      %v1186 = vld [vmem:[%s10 + $0x258] sm:$0xff]
      %v1187 = vld [vmem:[%s10 + $0x260] sm:$0xff]
      %v1188 = vld [vmem:[%s10 + $0x268] sm:$0xf]
      %v1189 = vld [vmem:[%s10 + $0x26c] sm:$0xff]
      %v1190 = vld [vmem:[%s10 + $0x274] sm:$0xff]
      %v1191 = vld [vmem:[%s10 + $0x27c] sm:$0xf]
      %v1192 = vld [vmem:[%s11] sm:$0x1f]
      %v1194 = vlaneseq
      %v1195 = vshrl.u32 %v1194, 7
      %v1196 = vsub.s32 0, %v1195
      %v1197 = vrot.slane %v1192, %v1196
      %v1198 = vlaneseq
      %v1199 = vshrl.u32 %v1198, 7
      %v1200 = vsub.s32 1, %v1199
      %v1201 = vrot.slane %v1192, %v1200
      %v1202 = vlaneseq
      %v1203 = vshrl.u32 %v1202, 7
      %v1204 = vsub.s32 2, %v1203
      %v1205 = vrot.slane %v1192, %v1204
      %v1206 = vlaneseq
      %v1207 = vshrl.u32 %v1206, 7
      %v1208 = vsub.s32 3, %v1207
      %v1209 = vrot.slane %v1192, %v1208
      %v1210 = vlaneseq
      %v1211 = vshrl.u32 %v1210, 7
      %v1212 = vsub.s32 4, %v1211
      %v1213 = vrot.slane %v1192, %v1212
      %v1315 = vunpack.c.l.b16 %v1096
      %v1316 = vunpack.c.h.b16 %v1096
      %v1317 = vunpack.c.l.b16 %v1097
      %v1318 = vunpack.c.h.b16 %v1097
      %v1319 = vunpack.c.l.b16 %v1098
      %v1320 = vunpack.c.l.b16 %v1099
      %v1321 = vunpack.c.h.b16 %v1099
      %v1322 = vunpack.c.l.b16 %v1100
      %v1323 = vunpack.c.h.b16 %v1100
      %v1324 = vunpack.c.l.b16 %v1101
      %v1325 = vunpack.c.l.b16 %v1102
      %v1326 = vunpack.c.h.b16 %v1102
      %v1327 = vunpack.c.l.b16 %v1103
      %v1328 = vunpack.c.h.b16 %v1103
      %v1329 = vunpack.c.l.b16 %v1104
      %v1330 = vunpack.c.l.b16 %v1105
      %v1331 = vunpack.c.h.b16 %v1105
      %v1332 = vunpack.c.l.b16 %v1106
      %v1333 = vunpack.c.h.b16 %v1106
      %v1334 = vunpack.c.l.b16 %v1107
      %v1335 = vunpack.c.l.b16 %v1108
      %v1336 = vunpack.c.h.b16 %v1108
      %v1337 = vunpack.c.l.b16 %v1109
      %v1338 = vunpack.c.h.b16 %v1109
      %v1339 = vunpack.c.l.b16 %v1110
      %v1340 = vunpack.c.l.b16 %v1111
      %v1341 = vunpack.c.h.b16 %v1111
      %v1342 = vunpack.c.l.b16 %v1112
      %v1343 = vunpack.c.h.b16 %v1112
      %v1344 = vunpack.c.l.b16 %v1113
      %v1345 = vunpack.c.l.b16 %v1114
      %v1346 = vunpack.c.h.b16 %v1114
      %v1347 = vunpack.c.l.b16 %v1115
      %v1348 = vunpack.c.h.b16 %v1115
      %v1349 = vunpack.c.l.b16 %v1116
      %v1350 = vunpack.c.l.b16 %v1117
      %v1351 = vunpack.c.h.b16 %v1117
      %v1352 = vunpack.c.l.b16 %v1118
      %v1353 = vunpack.c.h.b16 %v1118
      %v1354 = vunpack.c.l.b16 %v1119
      %v1355 = vunpack.c.l.b16 %v1120
      %v1356 = vunpack.c.h.b16 %v1120
      %v1357 = vunpack.c.l.b16 %v1121
      %v1358 = vunpack.c.h.b16 %v1121
      %v1359 = vunpack.c.l.b16 %v1122
      %v1360 = vunpack.c.l.b16 %v1123
      %v1361 = vunpack.c.h.b16 %v1123
      %v1362 = vunpack.c.l.b16 %v1124
      %v1363 = vunpack.c.h.b16 %v1124
      %v1364 = vunpack.c.l.b16 %v1125
      %v1365 = vunpack.c.l.b16 %v1126
      %v1366 = vunpack.c.h.b16 %v1126
      %v1367 = vunpack.c.l.b16 %v1127
      %v1368 = vunpack.c.h.b16 %v1127
      %v1369 = vunpack.c.l.b16 %v1128
      %v1370 = vunpack.c.l.b16 %v1129
      %v1371 = vunpack.c.h.b16 %v1129
      %v1372 = vunpack.c.l.b16 %v1130
      %v1373 = vunpack.c.h.b16 %v1130
      %v1374 = vunpack.c.l.b16 %v1131
      %v1375 = vunpack.c.l.b16 %v1132
      %v1376 = vunpack.c.h.b16 %v1132
      %v1377 = vunpack.c.l.b16 %v1133
      %v1378 = vunpack.c.h.b16 %v1133
      %v1379 = vunpack.c.l.b16 %v1134
      %v1380 = vunpack.c.l.b16 %v1135
      %v1381 = vunpack.c.h.b16 %v1135
      %v1382 = vunpack.c.l.b16 %v1136
      %v1383 = vunpack.c.h.b16 %v1136
      %v1384 = vunpack.c.l.b16 %v1137
      %v1385 = vunpack.c.l.b16 %v1138
      %v1386 = vunpack.c.h.b16 %v1138
      %v1387 = vunpack.c.l.b16 %v1139
      %v1388 = vunpack.c.h.b16 %v1139
      %v1389 = vunpack.c.l.b16 %v1140
      %v1390 = vunpack.c.l.b16 %v1141
      %v1391 = vunpack.c.h.b16 %v1141
      %v1392 = vunpack.c.l.b16 %v1142
      %v1393 = vunpack.c.h.b16 %v1142
      %v1394 = vunpack.c.l.b16 %v1143
      %v1395 = vunpack.c.l.b16 %v1144
      %v1396 = vunpack.c.h.b16 %v1144
      %v1397 = vunpack.c.l.b16 %v1145
      %v1398 = vunpack.c.h.b16 %v1145
      %v1399 = vunpack.c.l.b16 %v1146
      %v1400 = vunpack.c.l.b16 %v1147
      %v1401 = vunpack.c.h.b16 %v1147
      %v1402 = vunpack.c.l.b16 %v1148
      %v1403 = vunpack.c.h.b16 %v1148
      %v1404 = vunpack.c.l.b16 %v1149
      %v1405 = vunpack.c.l.b16 %v1150
      %v1406 = vunpack.c.h.b16 %v1150
      %v1407 = vunpack.c.l.b16 %v1151
      %v1408 = vunpack.c.h.b16 %v1151
      %v1409 = vunpack.c.l.b16 %v1152
      %v1410 = vunpack.c.l.b16 %v1153
      %v1411 = vunpack.c.h.b16 %v1153
      %v1412 = vunpack.c.l.b16 %v1154
      %v1413 = vunpack.c.h.b16 %v1154
      %v1414 = vunpack.c.l.b16 %v1155
      %v1415 = vunpack.c.l.b16 %v1156
      %v1416 = vunpack.c.h.b16 %v1156
      %v1417 = vunpack.c.l.b16 %v1157
      %v1418 = vunpack.c.h.b16 %v1157
      %v1419 = vunpack.c.l.b16 %v1158
      %v1420 = vunpack.c.l.b16 %v1159
      %v1421 = vunpack.c.h.b16 %v1159
      %v1422 = vunpack.c.l.b16 %v1160
      %v1423 = vunpack.c.h.b16 %v1160
      %v1424 = vunpack.c.l.b16 %v1161
      %v1425 = vunpack.c.l.b16 %v1162
      %v1426 = vunpack.c.h.b16 %v1162
      %v1427 = vunpack.c.l.b16 %v1163
      %v1428 = vunpack.c.h.b16 %v1163
      %v1429 = vunpack.c.l.b16 %v1164
      %v1430 = vunpack.c.l.b16 %v1165
      %v1431 = vunpack.c.h.b16 %v1165
      %v1432 = vunpack.c.l.b16 %v1166
      %v1433 = vunpack.c.h.b16 %v1166
      %v1434 = vunpack.c.l.b16 %v1167
      %v1435 = vunpack.c.l.b16 %v1168
      %v1436 = vunpack.c.h.b16 %v1168
      %v1437 = vunpack.c.l.b16 %v1169
      %v1438 = vunpack.c.h.b16 %v1169
      %v1439 = vunpack.c.l.b16 %v1170
      %v1440 = vunpack.c.l.b16 %v1171
      %v1441 = vunpack.c.h.b16 %v1171
      %v1442 = vunpack.c.l.b16 %v1172
      %v1443 = vunpack.c.h.b16 %v1172
      %v1444 = vunpack.c.l.b16 %v1173
      %v1445 = vunpack.c.l.b16 %v1174
      %v1446 = vunpack.c.h.b16 %v1174
      %v1447 = vunpack.c.l.b16 %v1175
      %v1448 = vunpack.c.h.b16 %v1175
      %v1449 = vunpack.c.l.b16 %v1176
      %v1450 = vunpack.c.l.b16 %v1177
      %v1451 = vunpack.c.h.b16 %v1177
      %v1452 = vunpack.c.l.b16 %v1178
      %v1453 = vunpack.c.h.b16 %v1178
      %v1454 = vunpack.c.l.b16 %v1179
      %v1455 = vunpack.c.l.b16 %v1180
      %v1456 = vunpack.c.h.b16 %v1180
      %v1457 = vunpack.c.l.b16 %v1181
      %v1458 = vunpack.c.h.b16 %v1181
      %v1459 = vunpack.c.l.b16 %v1182
      %v1460 = vunpack.c.l.b16 %v1183
      %v1461 = vunpack.c.h.b16 %v1183
      %v1462 = vunpack.c.l.b16 %v1184
      %v1463 = vunpack.c.h.b16 %v1184
      %v1464 = vunpack.c.l.b16 %v1185
      %v1465 = vunpack.c.l.b16 %v1186
      %v1466 = vunpack.c.h.b16 %v1186
      %v1467 = vunpack.c.l.b16 %v1187
      %v1468 = vunpack.c.h.b16 %v1187
      %v1469 = vunpack.c.l.b16 %v1188
      %v1470 = vunpack.c.l.b16 %v1189
      %v1471 = vunpack.c.h.b16 %v1189
      %v1472 = vunpack.c.l.b16 %v1190
      %v1473 = vunpack.c.h.b16 %v1190
      %v1474 = vunpack.c.l.b16 %v1191
      %v1475 = vpack.c.b16 %v1320, %v1315
      %v1476 = vpack.c.b16 %v1321, %v1316
      %v1477 = vpack.c.b16 %v1322, %v1317
      %v1478 = vpack.c.b16 %v1323, %v1318
      %v1479 = vpack.c.b16 %v1324, %v1319
      %v1480 = vpack.c.b16 %v1330, %v1325
      %v1481 = vpack.c.b16 %v1331, %v1326
      %v1482 = vpack.c.b16 %v1332, %v1327
      %v1483 = vpack.c.b16 %v1333, %v1328
      %v1484 = vpack.c.b16 %v1334, %v1329
      %v1485 = vpack.c.b16 %v1340, %v1335
      %v1486 = vpack.c.b16 %v1341, %v1336
      %v1487 = vpack.c.b16 %v1342, %v1337
      %v1488 = vpack.c.b16 %v1343, %v1338
      %v1489 = vpack.c.b16 %v1344, %v1339
      %v1490 = vpack.c.b16 %v1350, %v1345
      %v1491 = vpack.c.b16 %v1351, %v1346
      %v1492 = vpack.c.b16 %v1352, %v1347
      %v1493 = vpack.c.b16 %v1353, %v1348
      %v1494 = vpack.c.b16 %v1354, %v1349
      %v1495 = vpack.c.b16 %v1360, %v1355
      %v1496 = vpack.c.b16 %v1361, %v1356
      %v1497 = vpack.c.b16 %v1362, %v1357
      %v1498 = vpack.c.b16 %v1363, %v1358
      %v1499 = vpack.c.b16 %v1364, %v1359
      %v1500 = vpack.c.b16 %v1370, %v1365
      %v1501 = vpack.c.b16 %v1371, %v1366
      %v1502 = vpack.c.b16 %v1372, %v1367
      %v1503 = vpack.c.b16 %v1373, %v1368
      %v1504 = vpack.c.b16 %v1374, %v1369
      %v1505 = vpack.c.b16 %v1380, %v1375
      %v1506 = vpack.c.b16 %v1381, %v1376
      %v1507 = vpack.c.b16 %v1382, %v1377
      %v1508 = vpack.c.b16 %v1383, %v1378
      %v1509 = vpack.c.b16 %v1384, %v1379
      %v1510 = vpack.c.b16 %v1390, %v1385
      %v1511 = vpack.c.b16 %v1391, %v1386
      %v1512 = vpack.c.b16 %v1392, %v1387
      %v1513 = vpack.c.b16 %v1393, %v1388
      %v1514 = vpack.c.b16 %v1394, %v1389
      %v1515 = vpack.c.b16 %v1400, %v1395
      %v1516 = vpack.c.b16 %v1401, %v1396
      %v1517 = vpack.c.b16 %v1402, %v1397
      %v1518 = vpack.c.b16 %v1403, %v1398
      %v1519 = vpack.c.b16 %v1404, %v1399
      %v1520 = vpack.c.b16 %v1410, %v1405
      %v1521 = vpack.c.b16 %v1411, %v1406
      %v1522 = vpack.c.b16 %v1412, %v1407
      %v1523 = vpack.c.b16 %v1413, %v1408
      %v1524 = vpack.c.b16 %v1414, %v1409
      %v1525 = vpack.c.b16 %v1420, %v1415
      %v1526 = vpack.c.b16 %v1421, %v1416
      %v1527 = vpack.c.b16 %v1422, %v1417
      %v1528 = vpack.c.b16 %v1423, %v1418
      %v1529 = vpack.c.b16 %v1424, %v1419
      %v1530 = vpack.c.b16 %v1430, %v1425
      %v1531 = vpack.c.b16 %v1431, %v1426
      %v1532 = vpack.c.b16 %v1432, %v1427
      %v1533 = vpack.c.b16 %v1433, %v1428
      %v1534 = vpack.c.b16 %v1434, %v1429
      %v1535 = vpack.c.b16 %v1440, %v1435
      %v1536 = vpack.c.b16 %v1441, %v1436
      %v1537 = vpack.c.b16 %v1442, %v1437
      %v1538 = vpack.c.b16 %v1443, %v1438
      %v1539 = vpack.c.b16 %v1444, %v1439
      %v1540 = vpack.c.b16 %v1450, %v1445
      %v1541 = vpack.c.b16 %v1451, %v1446
      %v1542 = vpack.c.b16 %v1452, %v1447
      %v1543 = vpack.c.b16 %v1453, %v1448
      %v1544 = vpack.c.b16 %v1454, %v1449
      %v1545 = vpack.c.b16 %v1460, %v1455
      %v1546 = vpack.c.b16 %v1461, %v1456
      %v1547 = vpack.c.b16 %v1462, %v1457
      %v1548 = vpack.c.b16 %v1463, %v1458
      %v1549 = vpack.c.b16 %v1464, %v1459
      %v1550 = vpack.c.b16 %v1470, %v1465
      %v1551 = vpack.c.b16 %v1471, %v1466
      %v1552 = vpack.c.b16 %v1472, %v1467
      %v1553 = vpack.c.b16 %v1473, %v1468
      %v1554 = vpack.c.b16 %v1474, %v1469
      %1635 = vmatprep.subr.bf16.mxu0 %v1476
      %1636 = vmatpush1.bf16.msra.mxu0 %v1475
      %1637 = vmatprep.subr.bf16.mxu0 %v1481
      %1638 = vmatpush1.bf16.msra.mxu0 %v1480
      %1639 = vmatprep.subr.bf16.mxu0 %v1486
      %1640 = vmatpush1.bf16.msra.mxu0 %v1485
      %1641 = vmatprep.subr.bf16.mxu0 %v1491
      %1642 = vmatpush1.bf16.msra.mxu0 %v1490
      %1643 = vmatprep.subr.bf16.mxu0 %v1496
      %1644 = vmatpush1.bf16.msra.mxu0 %v1495
      %1645 = vmatprep.subr.bf16.mxu0 %v1501
      %1646 = vmatpush1.bf16.msra.mxu0 %v1500
      %1647 = vmatprep.subr.bf16.mxu0 %v1506
      %1648 = vmatpush1.bf16.msra.mxu0 %v1505
      %1649 = vmatprep.subr.bf16.mxu0 %v1511
      %1650 = vmatpush1.bf16.msra.mxu0 %v1510
      %1651 = vmatprep.subr.bf16.mxu0 %v1516
      %1652 = vmatpush1.bf16.msra.mxu0 %v1515
      %1653 = vmatprep.subr.bf16.mxu0 %v1521
      %1654 = vmatpush1.bf16.msra.mxu0 %v1520
      %1655 = vmatprep.subr.bf16.mxu0 %v1526
      %1656 = vmatpush1.bf16.msra.mxu0 %v1525
      %1657 = vmatprep.subr.bf16.mxu0 %v1531
      %1658 = vmatpush1.bf16.msra.mxu0 %v1530
      %1659 = vmatprep.subr.bf16.mxu0 %v1536
      %1660 = vmatpush1.bf16.msra.mxu0 %v1535
      %1661 = vmatprep.subr.bf16.mxu0 %v1541
      %1662 = vmatpush1.bf16.msra.mxu0 %v1540
      %1663 = vmatprep.subr.bf16.mxu0 %v1546
      %1664 = vmatpush1.bf16.msra.mxu0 %v1545
      %1665 = vmatprep.subr.bf16.mxu0 %v1551
      %1666 = vmatpush1.bf16.msra.mxu0 %v1550
      %1667 = vmatprep.mubr.bf16.mxu0 %v1095
      %1668 = vmatmul.mubr.bf16.gmra.mrb[0].mxu0 %v1094
      %v1669 = vpop.f32.mrb[0].mxu0
      %v1670 = vadd.f32 %v1197, %v1669
      %v1671 = vpop.f32.mrb[0].mxu0
      %v1672 = vadd.f32 %v1201, %v1671
      %v1673 = vpop.f32.mrb[0].mxu0
      %v1674 = vpop.f32.mrb[0].mxu0
      %1675 = vdwg.mxu0
      %1676 = vmatprep.subr.bf16.mxu0 %v1478
      %1677 = vmatpush1.bf16.msra.mxu0 %v1477
      %1678 = vmatprep.subr.bf16.mxu0 %v1483
      %1679 = vmatpush1.bf16.msra.mxu0 %v1482
      %1680 = vmatprep.subr.bf16.mxu0 %v1488
      %1681 = vmatpush1.bf16.msra.mxu0 %v1487
      %1682 = vmatprep.subr.bf16.mxu0 %v1493
      %1683 = vmatpush1.bf16.msra.mxu0 %v1492
      %1684 = vmatprep.subr.bf16.mxu0 %v1498
      %1685 = vmatpush1.bf16.msra.mxu0 %v1497
      %1686 = vmatprep.subr.bf16.mxu0 %v1503
      %1687 = vmatpush1.bf16.msra.mxu0 %v1502
      %1688 = vmatprep.subr.bf16.mxu0 %v1508
      %1689 = vmatpush1.bf16.msra.mxu0 %v1507
      %1690 = vmatprep.subr.bf16.mxu0 %v1513
      %1691 = vmatpush1.bf16.msra.mxu0 %v1512
      %1692 = vmatprep.subr.bf16.mxu0 %v1518
      %1693 = vmatpush1.bf16.msra.mxu0 %v1517
      %1694 = vmatprep.subr.bf16.mxu0 %v1523
      %1695 = vmatpush1.bf16.msra.mxu0 %v1522
      %1696 = vmatprep.subr.bf16.mxu0 %v1528
      %1697 = vmatpush1.bf16.msra.mxu0 %v1527
      %1698 = vmatprep.subr.bf16.mxu0 %v1533
      %1699 = vmatpush1.bf16.msra.mxu0 %v1532
      %1700 = vmatprep.subr.bf16.mxu0 %v1538
      %1701 = vmatpush1.bf16.msra.mxu0 %v1537
      %1702 = vmatprep.subr.bf16.mxu0 %v1543
      %1703 = vmatpush1.bf16.msra.mxu0 %v1542
      %1704 = vmatprep.subr.bf16.mxu0 %v1548
      %1705 = vmatpush1.bf16.msra.mxu0 %v1547
      %1706 = vmatprep.subr.bf16.mxu0 %v1553
      %1707 = vmatpush1.bf16.msra.mxu0 %v1552
      %1708 = vmatprep.mubr.bf16.mxu0 %v1095
      %1709 = vmatmul.mubr.bf16.gmra.mrb[0].mxu0 %v1094
      %v1710 = vpop.f32.mrb[0].mxu0
      %v1711 = vadd.f32 %v1205, %v1710
      %v1712 = vpop.f32.mrb[0].mxu0
      %v1713 = vadd.f32 %v1209, %v1712
      %v1714 = vpop.f32.mrb[0].mxu0
      %v1715 = vpop.f32.mrb[0].mxu0
      %1716 = vdwg.mxu0
      %1717 = vmatprep.subr.bf16.mxu0 0
      %1718 = vmatpush1.bf16.msra.mxu0 %v1479
      %1719 = vmatprep.subr.bf16.mxu0 0
      %1720 = vmatpush1.bf16.msra.mxu0 %v1484
      %1721 = vmatprep.subr.bf16.mxu0 0
      %1722 = vmatpush1.bf16.msra.mxu0 %v1489
      %1723 = vmatprep.subr.bf16.mxu0 0
      %1724 = vmatpush1.bf16.msra.mxu0 %v1494
      %1725 = vmatprep.subr.bf16.mxu0 0
      %1726 = vmatpush1.bf16.msra.mxu0 %v1499
      %1727 = vmatprep.subr.bf16.mxu0 0
      %1728 = vmatpush1.bf16.msra.mxu0 %v1504
      %1729 = vmatprep.subr.bf16.mxu0 0
      %1730 = vmatpush1.bf16.msra.mxu0 %v1509
      %1731 = vmatprep.subr.bf16.mxu0 0
      %1732 = vmatpush1.bf16.msra.mxu0 %v1514
      %1733 = vmatprep.subr.bf16.mxu0 0
      %1734 = vmatpush1.bf16.msra.mxu0 %v1519
      %1735 = vmatprep.subr.bf16.mxu0 0
      %1736 = vmatpush1.bf16.msra.mxu0 %v1524
      %1737 = vmatprep.subr.bf16.mxu0 0
      %1738 = vmatpush1.bf16.msra.mxu0 %v1529
      %1739 = vmatprep.subr.bf16.mxu0 0
      %1740 = vmatpush1.bf16.msra.mxu0 %v1534
      %1741 = vmatprep.subr.bf16.mxu0 0
      %1742 = vmatpush1.bf16.msra.mxu0 %v1539
      %1743 = vmatprep.subr.bf16.mxu0 0
      %1744 = vmatpush1.bf16.msra.mxu0 %v1544
      %1745 = vmatprep.subr.bf16.mxu0 0
      %1746 = vmatpush1.bf16.msra.mxu0 %v1549
      %1747 = vmatprep.subr.bf16.mxu0 0
      %1748 = vmatpush1.bf16.msra.mxu0 %v1554
      %1749 = vmatprep.mubr.bf16.mxu0 %v1095
      %1750 = vmatmul.mubr.bf16.gmra.mrb[0].mxu0 %v1094
      %v1751 = vpop.f32.mrb[0].mxu0
      %v1752 = vadd.f32 %v1213, %v1751
      %v1753 = vpop.f32.mrb[0].mxu0
      %v1754 = vpop.f32.mrb[0].mxu0
      %v1755 = vpop.f32.mrb[0].mxu0
      %1756 = vdwg.mxu0
      %v1757 = vpack.c.bf16 %v1670, %v1670
      %v1758 = vpack.c.bf16 %v1672, %v1672
      %v1759 = vpack.c.bf16 %v1711, %v1711
      %v1760 = vpack.c.bf16 %v1713, %v1713
      %v1761 = vpack.c.bf16 %v1752, %v1752
      %v1767 = vunpack.c.l.b16 %v1757
      %v1768 = vunpack.c.l.b16 %v1758
      %v1769 = vunpack.c.l.b16 %v1759
      %v1770 = vunpack.c.l.b16 %v1760
      %v1771 = vunpack.c.l.b16 %v1761
      %v1772 = vpack.c.b16 %v1768, %v1767
      %v1773 = vpack.c.b16 %v1770, %v1769
      %v1774 = vpack.c.b16 %v1771, %v1771
      %1778 = vst [vmem:[%s483] sm:$0xff] %v1772
      %1779 = vst [vmem:[%s483 + $0x8] sm:$0xff] %v1773
      %1780 = vst [vmem:[%s483 + $0x10] sm:$0xf] %v1774
      %p1781 = scmp.lt.s32.totalorder %s28, 1
      %s1782 = scalar_select %p1781, %s28, 1
      %p1783 = scmp.lt.s32.totalorder %s27, 0
      %s1784 = scalar_select %p1783, %s27, 0
      %s1785 = smul.addr %s1784, 5
      %s1786 = smul.addr %s1782, 5
      %s1787 = sadd.s32 %s1785, %s1786
      %s1788 = smul.addr %s1787, 4
      %s1789 = scalar_lea.vmem %s12, %s1788
      // Predicated region
      $region69: #{comp_trans_tts_forward.1} parent=67 // pred_check
        %p1790 = pneg %p324
      $region70: #{comp_trans_tts_forward.1} parent=67 // pred_check_branch
        %1792 = sbr.rel (%p1790) target = $region72
      $region71: #{comp_trans_tts_forward.1} parent=67 // pred_region
        _
      $region72: #{comp_trans_tts_forward.1} parent=67 // pred_fallthru
        _
    $region68: #{comp_trans_tts_forward.1} parent=5 // pred_fallthru
      _
    %p1793 = scmp.le.s32.totalorder 2, %s18
    // Predicated region
    $region73: #{comp_trans_tts_forward.1} parent=5 // pred_check
      %p1794 = pneg %p1793
    $region74: #{comp_trans_tts_forward.1} parent=5 // pred_check_branch
      %1796 = sbr.rel (%p1794) target = $region76
    $region75: #{comp_trans_tts_forward.1} parent=5 // pred_region
      %s1797 = ssub.s32 %s18, 2
      // Predicated region
      $region77: #{comp_trans_tts_forward.1} parent=75 // pred_check
        %p1798 = pneg %p330
      $region78: #{comp_trans_tts_forward.1} parent=75 // pred_check_branch
        %1800 = sbr.rel (%p1798) target = $region80
      $region79: #{comp_trans_tts_forward.1} parent=75 // pred_region
        %p1801 = scmp.lt.s32.totalorder %s30, 1
        %s1802 = scalar_select %p1801, %s30, 1
        %p1803 = scmp.lt.s32.totalorder %s29, 0
        %s1804 = scalar_select %p1803, %s29, 0
        %s1805 = smul.addr %s1804, 5
        %s1806 = smul.addr %s1802, 5
        %s1807 = sadd.s32 %s1805, %s1806
        %s1808 = smul.addr %s1807, 4
        %s1809 = scalar_lea.vmem %s12, %s1808
      $region80: #{comp_trans_tts_forward.1} parent=75 // pred_fallthru
        _
    $region76: #{comp_trans_tts_forward.1} parent=5 // pred_fallthru
      _
  $region6: #{comp_trans_tts_forward.1} parent=0 // loop_footer
    %s22 = sadd.s32 1, %s18
  $region7: #{comp_trans_tts_forward.1} parent=0 // loop_footer_branch
    %17 = sbr.rel target = $region3
  $region8: #{comp_trans_tts_forward.1} parent=0 // loop_exit
    _

</llo_original>
